<compile_context>
chip_gen: v7x
topology: tpu7x:2x2x1
jax: 0.10.0
libtpu: 0.0.40
codegen_flags: <defaults>
</compile_context>

<pallas_src>
import jax
import jax.numpy as jnp
import numpy as np
from jax import lax
from jax.experimental import pallas as pl
from jax.experimental.pallas import tpu as pltpu

EPS = 1e-5


def conv_bn_kernel(w_ref, x_ref, gamma_ref, beta_ref, o_ref):
    # w_ref:     (TCO, Cin)  bf16   -- one block of output channels
    # x_ref:     (Cin, M)    bf16   -- full activation slab (resident across grid)
    # gamma_ref: (TCO, 1)    f32
    # beta_ref:  (TCO, 1)    f32
    # o_ref:     (TCO, M)    f32
    y = jnp.dot(w_ref[...], x_ref[...], preferred_element_type=jnp.float32)  # 1x1 conv

    m = y.shape[1]
    inv_m = 1.0 / m
    s1 = jnp.sum(y, axis=1, keepdims=True)              # (TCO, 1)
    s2 = jnp.sum(y * y, axis=1, keepdims=True)          # (TCO, 1)
    mean = s1 * inv_m
    # Biased variance (PyTorch BN training-mode normalization); clamp for safety
    # against cancellation in the one-pass formula.
    var = jnp.maximum(s2 * inv_m - mean * mean, 0.0)
    inv = lax.rsqrt(var + EPS)

    scale = gamma_ref[...] * inv                         # (TCO, 1)
    shift = beta_ref[...] - mean * scale                 # (TCO, 1)
    o_ref[...] = (y * scale + shift).astype(o_ref.dtype)


def conv2d_bn(x_nchw, w_oihw, gamma, beta, *, tco=112):
    n, cin, h, w = x_nchw.shape
    cout = w_oihw.shape[0]
    M = n * h * w

    # For N == 1 this transpose only moves a degenerate axis -> XLA treats it as a
    # free reshape (no HBM pass).  Cast to bf16 for the matmul operands; BN math
    # and the output remain f32.
    x2d = jnp.transpose(x_nchw, (1, 0, 2, 3)).reshape(cin, M).astype(jnp.bfloat16)
    w2d = w_oihw.reshape(cout, cin).astype(jnp.bfloat16)
    g2d = gamma.reshape(cout, 1).astype(jnp.float32)
    b2d = beta.reshape(cout, 1).astype(jnp.float32)

    assert cout % tco == 0, (cout, tco)
    # NOTE: if this kernel is reused with much larger M (bigger batch), the full
    # (Cin, M) X block would need M tiling to stay inside v7x's 64 MiB VMEM.

    out2d = pl.pallas_call(
        conv_bn_kernel,
        out_shape=jax.ShapeDtypeStruct((cout, M), jnp.float32),
        grid=(cout // tco,),
        in_specs=[
            pl.BlockSpec((tco, cin), lambda j: (j, 0)),   # weight block (pipelined)
            pl.BlockSpec((cin, M), lambda j: (0, 0)),      # X: same block -> resident
            pl.BlockSpec((tco, 1), lambda j: (j, 0)),      # gamma block
            pl.BlockSpec((tco, 1), lambda j: (j, 0)),      # beta block
        ],
        out_specs=pl.BlockSpec((tco, M), lambda j: (j, 0)),
        compiler_params=pltpu.CompilerParams(
            dimension_semantics=("parallel",),             # 2 TCs on v7x; harmless on v5e/v6e
        ),
    )(w2d, x2d, g2d, b2d)

    # Free reshapes/transposes for N == 1.
    return jnp.transpose(out2d.reshape(cout, n, h, w), (1, 0, 2, 3))


def reference(x_nchw, w_oihw, gamma, beta):
    y = jax.lax.conv_general_dilated(
        x_nchw, w_oihw, window_strides=(1, 1), padding="VALID",
        dimension_numbers=("NCHW", "OIHW", "NCHW"),
    )
    mean = jnp.mean(y, axis=(0, 2, 3), keepdims=True)
    var = jnp.var(y, axis=(0, 2, 3), keepdims=True)
    return (y - mean) / jnp.sqrt(var + EPS) * gamma.reshape(1, -1, 1, 1) + beta.reshape(1, -1, 1, 1)


if __name__ == "__main__":
    N, CIN, H, W = 1, 1344, 14, 14
    COUT = 224

    key = jax.random.PRNGKey(0)
    kx, kw, kg, kb = jax.random.split(key, 4)

    x = jax.random.normal(kx, (N, CIN, H, W), dtype=jnp.float32)
    conv_w = jax.random.normal(kw, (COUT, CIN, 1, 1), dtype=jnp.float32) * 0.02
    gamma = 1.0 + 0.1 * jax.random.normal(kg, (COUT,), dtype=jnp.float32)
    beta = 0.1 * jax.random.normal(kb, (COUT,), dtype=jnp.float32)

    out = jax.block_until_ready(conv2d_bn(x, conv_w, gamma, beta))
    ref = jax.block_until_ready(reference(x, conv_w, gamma, beta))

    assert out.shape == (N, COUT, H, W), out.shape
    np.testing.assert_allclose(np.asarray(out), np.asarray(ref), rtol=5e-2, atol=5e-2)

    print("KERNEL_OK")
</pallas_src>

<mosaic_0001>
module attributes {stable_mosaic.version = 11 : i64} {
  func.func @conv_bn_kernel(%arg0: i32, %arg1: memref<112x1344xbf16, #tpu.memory_space<vmem>>, %arg2: memref<1344x196xbf16, #tpu.memory_space<vmem>>, %arg3: memref<112x1xf32, #tpu.memory_space<vmem>>, %arg4: memref<112x1xf32, #tpu.memory_space<vmem>>, %arg5: memref<112x196xf32, #tpu.memory_space<vmem>>) attributes {dimension_semantics = [#tpu.dimension_semantics<parallel>], iteration_bounds = array<i64: 2>, scalar_prefetch = 0 : i64, scratch_operands = 0 : i64, tpu.core_type = #tpu.core_type<tc>, window_params = [{transform_indices = @transform_0, window_bounds = array<i64: 112, 1344>}, {pipeline_mode = #tpu.pipeline_mode<synchronous>, transform_indices = @transform_1, window_bounds = array<i64: 1344, 196>}, {transform_indices = @transform_2, window_bounds = array<i64: 112, 1>}, {transform_indices = @transform_3, window_bounds = array<i64: 112, 1>}, {transform_indices = @transform_4, window_bounds = array<i64: 112, 196>}]} {
    %c0 = arith.constant 0 : index
    %c0_0 = arith.constant 0 : index
    %0 = vector.load %arg1[%c0, %c0_0] : memref<112x1344xbf16, #tpu.memory_space<vmem>>, vector<112x1344xbf16>
    %c0_1 = arith.constant 0 : index
    %c0_2 = arith.constant 0 : index
    %1 = vector.load %arg2[%c0_1, %c0_2] : memref<1344x196xbf16, #tpu.memory_space<vmem>>, vector<1344x196xbf16>
    %cst = arith.constant dense<0.000000e+00> : vector<112x196xf32>
    %2 = tpu.matmul %0, %1, %cst {dimension_numbers = #tpu.dot_dimension_numbers<[1], [0], [0], [1], [0, 0, 1, 1], [], []>} : vector<112x1344xbf16>, vector<1344x196xbf16>, vector<112x196xf32> -> vector<112x196xf32>
    %cst_3 = arith.constant dense<0.000000e+00> : vector<112xf32>
    %3 = vector.multi_reduction <add>, %2, %cst_3 [1] : vector<112x196xf32> to vector<112xf32>
    %4 = vector.shape_cast %3 : vector<112xf32> to vector<112x1xf32>
    %5 = arith.mulf %2, %2 : vector<112x196xf32>
    %cst_4 = arith.constant dense<0.000000e+00> : vector<112xf32>
    %6 = vector.multi_reduction <add>, %5, %cst_4 [1] : vector<112x196xf32> to vector<112xf32>
    %7 = vector.shape_cast %6 : vector<112xf32> to vector<112x1xf32>
    %cst_5 = arith.constant 0.00510204071 : f32
    %8 = vector.broadcast %cst_5 : f32 to vector<112x1xf32>
    %9 = arith.mulf %4, %8 : vector<112x1xf32>
    %cst_6 = arith.constant 0.00510204071 : f32
    %10 = vector.broadcast %cst_6 : f32 to vector<112x1xf32>
    %11 = arith.mulf %7, %10 : vector<112x1xf32>
    %12 = arith.mulf %9, %9 : vector<112x1xf32>
    %13 = arith.subf %11, %12 : vector<112x1xf32>
    %cst_7 = arith.constant 0.000000e+00 : f32
    %14 = vector.broadcast %cst_7 : f32 to vector<112x1xf32>
    %15 = arith.maximumf %13, %14 : vector<112x1xf32>
    %cst_8 = arith.constant 9.99999974E-6 : f32
    %16 = vector.broadcast %cst_8 : f32 to vector<112x1xf32>
    %17 = arith.addf %15, %16 : vector<112x1xf32>
    %18 = math.rsqrt %17 : vector<112x1xf32>
    %c0_9 = arith.constant 0 : index
    %c0_10 = arith.constant 0 : index
    %19 = vector.load %arg3[%c0_9, %c0_10] : memref<112x1xf32, #tpu.memory_space<vmem>>, vector<112x1xf32>
    %20 = arith.mulf %19, %18 : vector<112x1xf32>
    %c0_11 = arith.constant 0 : index
    %c0_12 = arith.constant 0 : index
    %21 = vector.load %arg4[%c0_11, %c0_12] : memref<112x1xf32, #tpu.memory_space<vmem>>, vector<112x1xf32>
    %22 = arith.mulf %9, %20 : vector<112x1xf32>
    %23 = arith.subf %21, %22 : vector<112x1xf32>
    %24 = vector.broadcast %20 : vector<112x1xf32> to vector<112x196xf32>
    %25 = arith.mulf %2, %24 : vector<112x196xf32>
    %26 = vector.broadcast %23 : vector<112x1xf32> to vector<112x196xf32>
    %27 = arith.addf %25, %26 : vector<112x196xf32>
    %c0_13 = arith.constant 0 : index
    %c0_14 = arith.constant 0 : index
    %28 = vector.load %arg5[%c0_13, %c0_14] : memref<112x196xf32, #tpu.memory_space<vmem>>, vector<112x196xf32>
    tpu.vector_store %arg5[%c0_13, %c0_14], %27 {strides = array<i32>} : memref<112x196xf32, #tpu.memory_space<vmem>>, vector<112x196xf32>,
    return
  }
  func.func @transform_0(%arg0: i32) -> (i32, i32) {
    %c0_i32 = arith.constant 0 : i32
    %c0_i32_0 = arith.constant 0 : i32
    return %arg0, %c0_i32 : i32, i32
  }
  func.func @transform_1(%arg0: i32) -> (i32, i32) {
    %c0_i32 = arith.constant 0 : i32
    %c0_i32_0 = arith.constant 0 : i32
    %c0_i32_1 = arith.constant 0 : i32
    return %c0_i32, %c0_i32_0 : i32, i32
  }
  func.func @transform_2(%arg0: i32) -> (i32, i32) {
    %c0_i32 = arith.constant 0 : i32
    %c0_i32_0 = arith.constant 0 : i32
    return %arg0, %c0_i32 : i32, i32
  }
  func.func @transform_3(%arg0: i32) -> (i32, i32) {
    %c0_i32 = arith.constant 0 : i32
    %c0_i32_0 = arith.constant 0 : i32
    return %arg0, %c0_i32 : i32, i32
  }
  func.func @transform_4(%arg0: i32) -> (i32, i32) {
    %c0_i32 = arith.constant 0 : i32
    %c0_i32_0 = arith.constant 0 : i32
    return %arg0, %c0_i32 : i32, i32
  }
}

</mosaic_0001>

<llo_original>
// kernel: tpu_custom_call.1
$region0: #{tpu_custom_call.1}
  #allocation0 [shape = 'u32[]', space=smem, size = 0x4, offset = 0x4, fixed_abs, tag = 'smem constant byte address 0x4 - core index']
  #allocation1 [shape = 'u32[144,128]{1,0:T(1,128)}', space=vmem, size = 0x12000, scoped, tag = 'internal scratch']
  %s0 = inlined_call_operand.vmem [shape: bf16[224,1344], index: 0, kind: input, shape index: {}]
  %s1 = inlined_call_operand.vmem [shape: bf16[1344,196], index: 1, kind: input, shape index: {}]
  %s2 = inlined_call_operand.vmem [shape: f32[224,1], index: 2, kind: input, shape index: {}]
  %s3 = inlined_call_operand.vmem [shape: f32[224,1], index: 3, kind: input, shape index: {}]
  %s4 = inlined_call_operand.vmem [shape: f32[224,196], index: 4, kind: output, shape index: {}]
  %s5 = sld [smem:[#allocation0]]
  $region49: #{tpu_custom_call.1} parent=0
    _
  %s7 = ssub.s32 1, %s5
  %s8 = scalar_select 0, %s7, %s5
  loop: start=0, step=1, limit=4
  $region2: #{tpu_custom_call.1} parent=0 // loop_pre_header
    _
  $region3: #{tpu_custom_call.1} parent=0 // loop_header
    %s10 = sphi 0, %s14
    %p11 = scmp.ge.s32.totalorder %s10, 4
    %s20 = sphi 0, %s22
    %s23 = sphi 0, %s20
    %s24 = sphi 0, %s23
    %s40 = sphi 0, %s24
    %s44 = sphi 0, %s44
    %s46 = sphi 0, %s44
    %s47 = sphi 0, %s46
    %s61 = sphi 0, %s47
    %s67 = sphi 0, %s69
    %s70 = sphi 0, %s67
    %s71 = sphi 0, %s70
    %s87 = sphi 0, %s71
    %s93 = sphi 0, %s95
    %s96 = sphi 0, %s93
    %s97 = sphi 0, %s96
    %s113 = sphi 0, %s97
    %s119 = sphi 0, %s121
    %s122 = sphi 0, %s119
    %s123 = sphi 0, %s122
    %s139 = sphi 0, %s123
  $region4: #{tpu_custom_call.1} parent=0 // loop_header_branch
    %13 = sbr.rel (%p11) target = $region8
  $region5: #{tpu_custom_call.1} parent=0 // loop_body
    %s15 = ssub.s32 %s10, 1
    %s16 = ssub.s32 %s10, 2
    %s17 = sadd.s32 %s10, 1
    %s18 = ssub.s32 %s10, %s17
    %p19 = scmp.eq.s32.totalorder %s18, 0
    %s21 = sadd.s32 %s20, 1
    %s22 = scalar_select %p19, %s20, %s21
    %p25 = pneg %p19
    %p26 = scmp.eq.s32.totalorder %s10, 1
    %p27 = por %p25, %p26
    %p28 = scmp.ne.s32.totalorder %s20, %s23
    %p29 = scmp.eq.s32.totalorder %s10, 0
    %p30 = por %p28, %p29
    %p31 = scmp.ne.s32.totalorder %s20, %s23
    %p32 = scmp.eq.s32.totalorder %s15, 1
    %p33 = por %p31, %p32
    %p34 = scmp.ne.s32.totalorder %s23, %s24
    %p35 = scmp.eq.s32.totalorder %s15, 0
    %p36 = por %p34, %p35
    %p37 = scmp.ne.s32.totalorder %s23, %s24
    %p38 = scmp.eq.s32.totalorder %s16, 1
    %p39 = por %p37, %p38
    %p41 = scmp.ne.s32.totalorder %s24, %s40
    %p42 = scmp.eq.s32.totalorder %s16, 0
    %p43 = por %p41, %p42
    %s45 = sadd.s32 %s44, 1
    %p48 = scmp.eq.s32.totalorder %s10, 1
    %p49 = scmp.ne.s32.totalorder %s44, %s46
    %p50 = scmp.eq.s32.totalorder %s10, 0
    %p51 = por %p49, %p50
    %p52 = scmp.ne.s32.totalorder %s44, %s46
    %p53 = scmp.eq.s32.totalorder %s15, 1
    %p54 = por %p52, %p53
    %p55 = scmp.ne.s32.totalorder %s46, %s47
    %p56 = scmp.eq.s32.totalorder %s15, 0
    %p57 = por %p55, %p56
    %p58 = scmp.ne.s32.totalorder %s46, %s47
    %p59 = scmp.eq.s32.totalorder %s16, 1
    %p60 = por %p58, %p59
    %p62 = scmp.ne.s32.totalorder %s47, %s61
    %p63 = scmp.eq.s32.totalorder %s16, 0
    %p64 = por %p62, %p63
    %s65 = ssub.s32 %s10, %s17
    %p66 = scmp.eq.s32.totalorder %s65, 0
    %s68 = sadd.s32 %s67, 1
    %s69 = scalar_select %p66, %s67, %s68
    %p72 = pneg %p66
    %p73 = scmp.eq.s32.totalorder %s10, 1
    %p74 = por %p72, %p73
    %p75 = scmp.ne.s32.totalorder %s67, %s70
    %p76 = scmp.eq.s32.totalorder %s10, 0
    %p77 = por %p75, %p76
    %p78 = scmp.ne.s32.totalorder %s67, %s70
    %p79 = scmp.eq.s32.totalorder %s15, 1
    %p80 = por %p78, %p79
    %p81 = scmp.ne.s32.totalorder %s70, %s71
    %p82 = scmp.eq.s32.totalorder %s15, 0
    %p83 = por %p81, %p82
    %p84 = scmp.ne.s32.totalorder %s70, %s71
    %p85 = scmp.eq.s32.totalorder %s16, 1
    %p86 = por %p84, %p85
    %p88 = scmp.ne.s32.totalorder %s71, %s87
    %p89 = scmp.eq.s32.totalorder %s16, 0
    %p90 = por %p88, %p89
    %s91 = ssub.s32 %s10, %s17
    %p92 = scmp.eq.s32.totalorder %s91, 0
    %s94 = sadd.s32 %s93, 1
    %s95 = scalar_select %p92, %s93, %s94
    %p98 = pneg %p92
    %p99 = scmp.eq.s32.totalorder %s10, 1
    %p100 = por %p98, %p99
    %p101 = scmp.ne.s32.totalorder %s93, %s96
    %p102 = scmp.eq.s32.totalorder %s10, 0
    %p103 = por %p101, %p102
    %p104 = scmp.ne.s32.totalorder %s93, %s96
    %p105 = scmp.eq.s32.totalorder %s15, 1
    %p106 = por %p104, %p105
    %p107 = scmp.ne.s32.totalorder %s96, %s97
    %p108 = scmp.eq.s32.totalorder %s15, 0
    %p109 = por %p107, %p108
    %p110 = scmp.ne.s32.totalorder %s96, %s97
    %p111 = scmp.eq.s32.totalorder %s16, 1
    %p112 = por %p110, %p111
    %p114 = scmp.ne.s32.totalorder %s97, %s113
    %p115 = scmp.eq.s32.totalorder %s16, 0
    %p116 = por %p114, %p115
    %s117 = ssub.s32 %s10, %s17
    %p118 = scmp.eq.s32.totalorder %s117, 0
    %s120 = sadd.s32 %s119, 1
    %s121 = scalar_select %p118, %s119, %s120
    %p124 = pneg %p118
    %p125 = scmp.eq.s32.totalorder %s10, 1
    %p126 = por %p124, %p125
    %p127 = scmp.ne.s32.totalorder %s119, %s122
    %p128 = scmp.eq.s32.totalorder %s10, 0
    %p129 = por %p127, %p128
    %p130 = scmp.ne.s32.totalorder %s119, %s122
    %p131 = scmp.eq.s32.totalorder %s15, 1
    %p132 = por %p130, %p131
    %p133 = scmp.ne.s32.totalorder %s122, %s123
    %p134 = scmp.eq.s32.totalorder %s15, 0
    %p135 = por %p133, %p134
    %p136 = scmp.ne.s32.totalorder %s122, %s123
    %p137 = scmp.eq.s32.totalorder %s16, 1
    %p138 = por %p136, %p137
    %p140 = scmp.ne.s32.totalorder %s123, %s139
    %p141 = scmp.eq.s32.totalorder %s16, 0
    %p142 = por %p140, %p141
    %p143 = scmp.le.s32.totalorder 1, %s10
    %p144 = scmp.lt.s32.totalorder %s10, 3
    %p145 = pnand %p143, %p144
    %p146 = pneg %p145
    // Predicated region
    $region9: #{tpu_custom_call.1} parent=5 // pred_check
      _
    $region10: #{tpu_custom_call.1} parent=5 // pred_check_branch
      %148 = sbr.rel (%p145) target = $region12
    $region11: #{tpu_custom_call.1} parent=5 // pred_region
      %s149 = ssub.s32 %s10, 1
      // Predicated region
      $region13: #{tpu_custom_call.1} parent=11 // pred_check
        %p150 = pneg %p57
      $region14: #{tpu_custom_call.1} parent=11 // pred_check_branch
        %152 = sbr.rel (%p150) target = $region16
      $region15: #{tpu_custom_call.1} parent=11 // pred_region
        _
      $region16: #{tpu_custom_call.1} parent=11 // pred_fallthru
        _
    $region12: #{tpu_custom_call.1} parent=5 // pred_fallthru
      _
    %p153 = scmp.lt.s32.totalorder %s10, 2
    // Predicated region
    $region17: #{tpu_custom_call.1} parent=5 // pred_check
      %p154 = pneg %p153
    $region18: #{tpu_custom_call.1} parent=5 // pred_check_branch
      %156 = sbr.rel (%p154) target = $region20
    $region19: #{tpu_custom_call.1} parent=5 // pred_region
      // Predicated region
      $region21: #{tpu_custom_call.1} parent=19 // pred_check
        %p157 = pneg %p30
      $region22: #{tpu_custom_call.1} parent=19 // pred_check_branch
        %159 = sbr.rel (%p157) target = $region24
      $region23: #{tpu_custom_call.1} parent=19 // pred_region
        %s160 = smul.u32 14, %s10
        %p161 = scmp.lt.s32.totalorder %s160, 27
        %s162 = scalar_select %p161, %s160, 27
        %s163 = smul.addr %s162, 11
        %s164 = smul.addr %s163, 4
        %s165 = scalar_lea.vmem %s0, %s164
        %s166 = smul.u32 14, %s10
      $region24: #{tpu_custom_call.1} parent=19 // pred_fallthru
        _
      // Predicated region
      $region25: #{tpu_custom_call.1} parent=19 // pred_check
        %p167 = pneg %p77
      $region26: #{tpu_custom_call.1} parent=19 // pred_check_branch
        %169 = sbr.rel (%p167) target = $region28
      $region27: #{tpu_custom_call.1} parent=19 // pred_region
        %s170 = smul.u32 14, %s10
        %p171 = scmp.lt.s32.totalorder %s170, 27
        %s172 = scalar_select %p171, %s170, 27
        %s173 = smul.addr %s172, 8
        %s174 = scalar_lea.vmem %s2, %s173
        %s175 = smul.u32 14, %s10
      $region28: #{tpu_custom_call.1} parent=19 // pred_fallthru
        _
      // Predicated region
      $region29: #{tpu_custom_call.1} parent=19 // pred_check
        %p176 = pneg %p103
      $region30: #{tpu_custom_call.1} parent=19 // pred_check_branch
        %178 = sbr.rel (%p176) target = $region32
      $region31: #{tpu_custom_call.1} parent=19 // pred_region
        %s179 = smul.u32 14, %s10
        %p180 = scmp.lt.s32.totalorder %s179, 27
        %s181 = scalar_select %p180, %s179, 27
        %s182 = smul.addr %s181, 8
        %s183 = scalar_lea.vmem %s3, %s182
        %s184 = smul.u32 14, %s10
      $region32: #{tpu_custom_call.1} parent=19 // pred_fallthru
        _
    $region20: #{tpu_custom_call.1} parent=5 // pred_fallthru
      _
    %p185 = scmp.le.s32.totalorder 1, %s10
    %p186 = scmp.lt.s32.totalorder %s10, 3
    %p187 = pnand %p185, %p186
    %p188 = pneg %p187
    // Predicated region
    $region33: #{tpu_custom_call.1} parent=5 // pred_check
      _
    $region34: #{tpu_custom_call.1} parent=5 // pred_check_branch
      %190 = sbr.rel (%p187) target = $region36
    $region35: #{tpu_custom_call.1} parent=5 // pred_region
      %s191 = ssub.s32 %s10, 1
      %s192 = smul.u32 14, %s15
      %p193 = scmp.lt.s32.totalorder %s192, 27
      %s194 = scalar_select %p193, %s192, 27
      %s195 = smul.addr %s194, 11
      %s196 = smul.addr %s195, 4
      %s197 = scalar_lea.vmem %s0, %s196
      %p198 = pneg %p36
      %p199 = pneg %p33
      %p200 = pneg %p57
      %p201 = pneg %p54
      %s202 = smul.u32 14, %s15
      %p203 = scmp.lt.s32.totalorder %s202, 27
      %s204 = scalar_select %p203, %s202, 27
      %s205 = smul.addr %s204, 8
      %s206 = scalar_lea.vmem %s2, %s205
      %p207 = pneg %p83
      %p208 = pneg %p80
      %s209 = smul.u32 14, %s15
      %p210 = scmp.lt.s32.totalorder %s209, 27
      %s211 = scalar_select %p210, %s209, 27
      %s212 = smul.addr %s211, 8
      %s213 = scalar_lea.vmem %s3, %s212
      %p214 = pneg %p109
      %p215 = pneg %p106
      %p216 = pneg %p135
      %p217 = pneg %p132
      %s218 = smul.u32 14, %s15
      %p219 = scmp.lt.s32.totalorder %s218, 27
      %s220 = scalar_select %p219, %s218, 27
      %s221 = smul.addr %s220, 2
      %s222 = smul.addr %s221, 8
      %s223 = scalar_lea.vmem %s4, %s222
      %s224 = smul.u32 14, %s15
      %p225 = scmp.lt.s32.totalorder %s224, 27
      %s226 = scalar_select %p225, %s224, 27
      %s227 = smul.addr %s226, 11
      %s228 = smul.addr %s227, 4
      %s229 = scalar_lea.vmem %s0, %s228
      %s230 = smul.u32 14, %s15
      %s231 = smul.u32 14, %s15
      %p232 = scmp.lt.s32.totalorder %s231, 27
      %s233 = scalar_select %p232, %s231, 27
      %s234 = smul.addr %s233, 8
      %s235 = scalar_lea.vmem %s2, %s234
      %s236 = smul.u32 14, %s15
      %s237 = smul.u32 14, %s15
      %p238 = scmp.lt.s32.totalorder %s237, 27
      %s239 = scalar_select %p238, %s237, 27
      %s240 = smul.addr %s239, 8
      %s241 = scalar_lea.vmem %s3, %s240
      %s242 = smul.u32 14, %s15
      %s243 = smul.u32 14, %s15
      %p244 = scmp.lt.s32.totalorder %s243, 27
      %s245 = scalar_select %p244, %s243, 27
      %s246 = smul.addr %s245, 2
      %s247 = smul.addr %s246, 8
      %s248 = scalar_lea.vmem %s4, %s247
      %s249 = smul.u32 14, %s15
      %v251 = vld [vmem:[%s229] sm:$0xff]
      %v252 = vld [vmem:[%s229 + $0x8] sm:$0xff]
      %v253 = vld [vmem:[%s229 + $0x10] sm:$0xff]
      %v254 = vld [vmem:[%s229 + $0x18] sm:$0xff]
      %v255 = vld [vmem:[%s229 + $0x20] sm:$0xff]
      %v256 = vld [vmem:[%s229 + $0x28] sm:$0xf]
      %v257 = vld [vmem:[%s229 + $0x2c] sm:$0xff]
      %v258 = vld [vmem:[%s229 + $0x34] sm:$0xff]
      %v259 = vld [vmem:[%s229 + $0x3c] sm:$0xff]
      %v260 = vld [vmem:[%s229 + $0x44] sm:$0xff]
      %v261 = vld [vmem:[%s229 + $0x4c] sm:$0xff]
      %v262 = vld [vmem:[%s229 + $0x54] sm:$0xf]
      %v263 = vld [vmem:[%s229 + $0x58] sm:$0xff]
      %v264 = vld [vmem:[%s229 + $0x60] sm:$0xff]
      %v265 = vld [vmem:[%s229 + $0x68] sm:$0xff]
      %v266 = vld [vmem:[%s229 + $0x70] sm:$0xff]
      %v267 = vld [vmem:[%s229 + $0x78] sm:$0xff]
      %v268 = vld [vmem:[%s229 + $0x80] sm:$0xf]
      %v269 = vld [vmem:[%s229 + $0x84] sm:$0xff]
      %v270 = vld [vmem:[%s229 + $0x8c] sm:$0xff]
      %v271 = vld [vmem:[%s229 + $0x94] sm:$0xff]
      %v272 = vld [vmem:[%s229 + $0x9c] sm:$0xff]
      %v273 = vld [vmem:[%s229 + $0xa4] sm:$0xff]
      %v274 = vld [vmem:[%s229 + $0xac] sm:$0xf]
      %v275 = vld [vmem:[%s229 + $0xb0] sm:$0xff]
      %v276 = vld [vmem:[%s229 + $0xb8] sm:$0xff]
      %v277 = vld [vmem:[%s229 + $0xc0] sm:$0xff]
      %v278 = vld [vmem:[%s229 + $0xc8] sm:$0xff]
      %v279 = vld [vmem:[%s229 + $0xd0] sm:$0xff]
      %v280 = vld [vmem:[%s229 + $0xd8] sm:$0xf]
      %v281 = vld [vmem:[%s229 + $0xdc] sm:$0xff]
      %v282 = vld [vmem:[%s229 + $0xe4] sm:$0xff]
      %v283 = vld [vmem:[%s229 + $0xec] sm:$0xff]
      %v284 = vld [vmem:[%s229 + $0xf4] sm:$0xff]
      %v285 = vld [vmem:[%s229 + $0xfc] sm:$0xff]
      %v286 = vld [vmem:[%s229 + $0x104] sm:$0xf]
      %v287 = vld [vmem:[%s229 + $0x108] sm:$0xff]
      %v288 = vld [vmem:[%s229 + $0x110] sm:$0xff]
      %v289 = vld [vmem:[%s229 + $0x118] sm:$0xff]
      %v290 = vld [vmem:[%s229 + $0x120] sm:$0xff]
      %v291 = vld [vmem:[%s229 + $0x128] sm:$0xff]
      %v292 = vld [vmem:[%s229 + $0x130] sm:$0xf]
      %v293 = vld [vmem:[%s229 + $0x134] sm:$0xff]
      %v294 = vld [vmem:[%s229 + $0x13c] sm:$0xff]
      %v295 = vld [vmem:[%s229 + $0x144] sm:$0xff]
      %v296 = vld [vmem:[%s229 + $0x14c] sm:$0xff]
      %v297 = vld [vmem:[%s229 + $0x154] sm:$0xff]
      %v298 = vld [vmem:[%s229 + $0x15c] sm:$0xf]
      %v299 = vld [vmem:[%s229 + $0x160] sm:$0xff]
      %v300 = vld [vmem:[%s229 + $0x168] sm:$0xff]
      %v301 = vld [vmem:[%s229 + $0x170] sm:$0xff]
      %v302 = vld [vmem:[%s229 + $0x178] sm:$0xff]
      %v303 = vld [vmem:[%s229 + $0x180] sm:$0xff]
      %v304 = vld [vmem:[%s229 + $0x188] sm:$0xf]
      %v305 = vld [vmem:[%s229 + $0x18c] sm:$0xff]
      %v306 = vld [vmem:[%s229 + $0x194] sm:$0xff]
      %v307 = vld [vmem:[%s229 + $0x19c] sm:$0xff]
      %v308 = vld [vmem:[%s229 + $0x1a4] sm:$0xff]
      %v309 = vld [vmem:[%s229 + $0x1ac] sm:$0xff]
      %v310 = vld [vmem:[%s229 + $0x1b4] sm:$0xf]
      %v311 = vld [vmem:[%s229 + $0x1b8] sm:$0xff]
      %v312 = vld [vmem:[%s229 + $0x1c0] sm:$0xff]
      %v313 = vld [vmem:[%s229 + $0x1c8] sm:$0xff]
      %v314 = vld [vmem:[%s229 + $0x1d0] sm:$0xff]
      %v315 = vld [vmem:[%s229 + $0x1d8] sm:$0xff]
      %v316 = vld [vmem:[%s229 + $0x1e0] sm:$0xf]
      %v317 = vld [vmem:[%s229 + $0x1e4] sm:$0xff]
      %v318 = vld [vmem:[%s229 + $0x1ec] sm:$0xff]
      %v319 = vld [vmem:[%s229 + $0x1f4] sm:$0xff]
      %v320 = vld [vmem:[%s229 + $0x1fc] sm:$0xff]
      %v321 = vld [vmem:[%s229 + $0x204] sm:$0xff]
      %v322 = vld [vmem:[%s229 + $0x20c] sm:$0xf]
      %v323 = vld [vmem:[%s229 + $0x210] sm:$0xff]
      %v324 = vld [vmem:[%s229 + $0x218] sm:$0xff]
      %v325 = vld [vmem:[%s229 + $0x220] sm:$0xff]
      %v326 = vld [vmem:[%s229 + $0x228] sm:$0xff]
      %v327 = vld [vmem:[%s229 + $0x230] sm:$0xff]
      %v328 = vld [vmem:[%s229 + $0x238] sm:$0xf]
      %v329 = vld [vmem:[%s229 + $0x23c] sm:$0xff]
      %v330 = vld [vmem:[%s229 + $0x244] sm:$0xff]
      %v331 = vld [vmem:[%s229 + $0x24c] sm:$0xff]
      %v332 = vld [vmem:[%s229 + $0x254] sm:$0xff]
      %v333 = vld [vmem:[%s229 + $0x25c] sm:$0xff]
      %v334 = vld [vmem:[%s229 + $0x264] sm:$0xf]
      %v335 = vld [vmem:[%s1] sm:$0xff]
      %v336 = vld [vmem:[%s1 + $0x8] sm:$0xff]
      %v337 = vld [vmem:[%s1 + $0x10] sm:$0xff]
      %v338 = vld [vmem:[%s1 + $0x18] sm:$0xff]
      %v339 = vld [vmem:[%s1 + $0x20] sm:$0xff]
      %v340 = vld [vmem:[%s1 + $0x28] sm:$0xff]
      %v341 = vld [vmem:[%s1 + $0x30] sm:$0xff]
      %v342 = vld [vmem:[%s1 + $0x38] sm:$0xff]
      %v343 = vld [vmem:[%s1 + $0x40] sm:$0xff]
      %v344 = vld [vmem:[%s1 + $0x48] sm:$0xff]
      %v345 = vld [vmem:[%s1 + $0x50] sm:$0xff]
      %v346 = vld [vmem:[%s1 + $0x58] sm:$0xff]
      %v347 = vld [vmem:[%s1 + $0x60] sm:$0xff]
      %v348 = vld [vmem:[%s1 + $0x68] sm:$0xff]
      %v349 = vld [vmem:[%s1 + $0x70] sm:$0xff]
      %v350 = vld [vmem:[%s1 + $0x78] sm:$0xff]
      %v351 = vld [vmem:[%s1 + $0x80] sm:$0xff]
      %v352 = vld [vmem:[%s1 + $0x88] sm:$0xff]
      %v353 = vld [vmem:[%s1 + $0x90] sm:$0xff]
      %v354 = vld [vmem:[%s1 + $0x98] sm:$0xff]
      %v355 = vld [vmem:[%s1 + $0xa0] sm:$0xff]
      %v356 = vld [vmem:[%s1 + $0xa8] sm:$0xff]
      %v357 = vld [vmem:[%s1 + $0xb0] sm:$0xff]
      %v358 = vld [vmem:[%s1 + $0xb8] sm:$0xff]
      %v359 = vld [vmem:[%s1 + $0xc0] sm:$0xff]
      %v360 = vld [vmem:[%s1 + $0xc8] sm:$0xff]
      %v361 = vld [vmem:[%s1 + $0xd0] sm:$0xff]
      %v362 = vld [vmem:[%s1 + $0xd8] sm:$0xff]
      %v363 = vld [vmem:[%s1 + $0xe0] sm:$0xff]
      %v364 = vld [vmem:[%s1 + $0xe8] sm:$0xff]
      %v365 = vld [vmem:[%s1 + $0xf0] sm:$0xff]
      %v366 = vld [vmem:[%s1 + $0xf8] sm:$0xff]
      %v367 = vld [vmem:[%s1 + $0x100] sm:$0xff]
      %v368 = vld [vmem:[%s1 + $0x108] sm:$0xff]
      %v369 = vld [vmem:[%s1 + $0x110] sm:$0xff]
      %v370 = vld [vmem:[%s1 + $0x118] sm:$0xff]
      %v371 = vld [vmem:[%s1 + $0x120] sm:$0xff]
      %v372 = vld [vmem:[%s1 + $0x128] sm:$0xff]
      %v373 = vld [vmem:[%s1 + $0x130] sm:$0xff]
      %v374 = vld [vmem:[%s1 + $0x138] sm:$0xff]
      %v375 = vld [vmem:[%s1 + $0x140] sm:$0xff]
      %v376 = vld [vmem:[%s1 + $0x148] sm:$0xff]
      %v377 = vld [vmem:[%s1 + $0x150] sm:$0xff]
      %v378 = vld [vmem:[%s1 + $0x158] sm:$0xff]
      %v379 = vld [vmem:[%s1 + $0x160] sm:$0xff]
      %v380 = vld [vmem:[%s1 + $0x168] sm:$0xff]
      %v381 = vld [vmem:[%s1 + $0x170] sm:$0xff]
      %v382 = vld [vmem:[%s1 + $0x178] sm:$0xff]
      %v383 = vld [vmem:[%s1 + $0x180] sm:$0xff]
      %v384 = vld [vmem:[%s1 + $0x188] sm:$0xff]
      %v385 = vld [vmem:[%s1 + $0x190] sm:$0xff]
      %v386 = vld [vmem:[%s1 + $0x198] sm:$0xff]
      %v387 = vld [vmem:[%s1 + $0x1a0] sm:$0xff]
      %v388 = vld [vmem:[%s1 + $0x1a8] sm:$0xff]
      %v389 = vld [vmem:[%s1 + $0x1b0] sm:$0xff]
      %v390 = vld [vmem:[%s1 + $0x1b8] sm:$0xff]
      %v391 = vld [vmem:[%s1 + $0x1c0] sm:$0xff]
      %v392 = vld [vmem:[%s1 + $0x1c8] sm:$0xff]
      %v393 = vld [vmem:[%s1 + $0x1d0] sm:$0xff]
      %v394 = vld [vmem:[%s1 + $0x1d8] sm:$0xff]
      %v395 = vld [vmem:[%s1 + $0x1e0] sm:$0xff]
      %v396 = vld [vmem:[%s1 + $0x1e8] sm:$0xff]
      %v397 = vld [vmem:[%s1 + $0x1f0] sm:$0xff]
      %v398 = vld [vmem:[%s1 + $0x1f8] sm:$0xff]
      %v399 = vld [vmem:[%s1 + $0x200] sm:$0xff]
      %v400 = vld [vmem:[%s1 + $0x208] sm:$0xff]
      %v401 = vld [vmem:[%s1 + $0x210] sm:$0xff]
      %v402 = vld [vmem:[%s1 + $0x218] sm:$0xff]
      %v403 = vld [vmem:[%s1 + $0x220] sm:$0xff]
      %v404 = vld [vmem:[%s1 + $0x228] sm:$0xff]
      %v405 = vld [vmem:[%s1 + $0x230] sm:$0xff]
      %v406 = vld [vmem:[%s1 + $0x238] sm:$0xff]
      %v407 = vld [vmem:[%s1 + $0x240] sm:$0xff]
      %v408 = vld [vmem:[%s1 + $0x248] sm:$0xff]
      %v409 = vld [vmem:[%s1 + $0x250] sm:$0xff]
      %v410 = vld [vmem:[%s1 + $0x258] sm:$0xff]
      %v411 = vld [vmem:[%s1 + $0x260] sm:$0xff]
      %v412 = vld [vmem:[%s1 + $0x268] sm:$0xff]
      %v413 = vld [vmem:[%s1 + $0x270] sm:$0xff]
      %v414 = vld [vmem:[%s1 + $0x278] sm:$0xff]
      %v415 = vld [vmem:[%s1 + $0x280] sm:$0xff]
      %v416 = vld [vmem:[%s1 + $0x288] sm:$0xff]
      %v417 = vld [vmem:[%s1 + $0x290] sm:$0xff]
      %v418 = vld [vmem:[%s1 + $0x298] sm:$0xff]
      %v419 = vld [vmem:[%s1 + $0x2a0] sm:$0xff]
      %v420 = vld [vmem:[%s1 + $0x2a8] sm:$0xff]
      %v421 = vld [vmem:[%s1 + $0x2b0] sm:$0xff]
      %v422 = vld [vmem:[%s1 + $0x2b8] sm:$0xff]
      %v423 = vld [vmem:[%s1 + $0x2c0] sm:$0xff]
      %v424 = vld [vmem:[%s1 + $0x2c8] sm:$0xff]
      %v425 = vld [vmem:[%s1 + $0x2d0] sm:$0xff]
      %v426 = vld [vmem:[%s1 + $0x2d8] sm:$0xff]
      %v427 = vld [vmem:[%s1 + $0x2e0] sm:$0xff]
      %v428 = vld [vmem:[%s1 + $0x2e8] sm:$0xff]
      %v429 = vld [vmem:[%s1 + $0x2f0] sm:$0xff]
      %v430 = vld [vmem:[%s1 + $0x2f8] sm:$0xff]
      %v431 = vld [vmem:[%s1 + $0x300] sm:$0xff]
      %v432 = vld [vmem:[%s1 + $0x308] sm:$0xff]
      %v433 = vld [vmem:[%s1 + $0x310] sm:$0xff]
      %v434 = vld [vmem:[%s1 + $0x318] sm:$0xff]
      %v435 = vld [vmem:[%s1 + $0x320] sm:$0xff]
      %v436 = vld [vmem:[%s1 + $0x328] sm:$0xff]
      %v437 = vld [vmem:[%s1 + $0x330] sm:$0xff]
      %v438 = vld [vmem:[%s1 + $0x338] sm:$0xff]
      %v439 = vld [vmem:[%s1 + $0x340] sm:$0xff]
      %v440 = vld [vmem:[%s1 + $0x348] sm:$0xff]
      %v441 = vld [vmem:[%s1 + $0x350] sm:$0xff]
      %v442 = vld [vmem:[%s1 + $0x358] sm:$0xff]
      %v443 = vld [vmem:[%s1 + $0x360] sm:$0xff]
      %v444 = vld [vmem:[%s1 + $0x368] sm:$0xff]
      %v445 = vld [vmem:[%s1 + $0x370] sm:$0xff]
      %v446 = vld [vmem:[%s1 + $0x378] sm:$0xff]
      %v447 = vld [vmem:[%s1 + $0x380] sm:$0xff]
      %v448 = vld [vmem:[%s1 + $0x388] sm:$0xff]
      %v449 = vld [vmem:[%s1 + $0x390] sm:$0xff]
      %v450 = vld [vmem:[%s1 + $0x398] sm:$0xff]
      %v451 = vld [vmem:[%s1 + $0x3a0] sm:$0xff]
      %v452 = vld [vmem:[%s1 + $0x3a8] sm:$0xff]
      %v453 = vld [vmem:[%s1 + $0x3b0] sm:$0xff]
      %v454 = vld [vmem:[%s1 + $0x3b8] sm:$0xff]
      %v455 = vld [vmem:[%s1 + $0x3c0] sm:$0xff]
      %v456 = vld [vmem:[%s1 + $0x3c8] sm:$0xff]
      %v457 = vld [vmem:[%s1 + $0x3d0] sm:$0xff]
      %v458 = vld [vmem:[%s1 + $0x3d8] sm:$0xff]
      %v459 = vld [vmem:[%s1 + $0x3e0] sm:$0xff]
      %v460 = vld [vmem:[%s1 + $0x3e8] sm:$0xff]
      %v461 = vld [vmem:[%s1 + $0x3f0] sm:$0xff]
      %v462 = vld [vmem:[%s1 + $0x3f8] sm:$0xff]
      %v463 = vld [vmem:[%s1 + $0x400] sm:$0xff]
      %v464 = vld [vmem:[%s1 + $0x408] sm:$0xff]
      %v465 = vld [vmem:[%s1 + $0x410] sm:$0xff]
      %v466 = vld [vmem:[%s1 + $0x418] sm:$0xff]
      %v467 = vld [vmem:[%s1 + $0x420] sm:$0xff]
      %v468 = vld [vmem:[%s1 + $0x428] sm:$0xff]
      %v469 = vld [vmem:[%s1 + $0x430] sm:$0xff]
      %v470 = vld [vmem:[%s1 + $0x438] sm:$0xff]
      %v471 = vld [vmem:[%s1 + $0x440] sm:$0xff]
      %v472 = vld [vmem:[%s1 + $0x448] sm:$0xff]
      %v473 = vld [vmem:[%s1 + $0x450] sm:$0xff]
      %v474 = vld [vmem:[%s1 + $0x458] sm:$0xff]
      %v475 = vld [vmem:[%s1 + $0x460] sm:$0xff]
      %v476 = vld [vmem:[%s1 + $0x468] sm:$0xff]
      %v477 = vld [vmem:[%s1 + $0x470] sm:$0xff]
      %v478 = vld [vmem:[%s1 + $0x478] sm:$0xff]
      %v479 = vld [vmem:[%s1 + $0x480] sm:$0xff]
      %v480 = vld [vmem:[%s1 + $0x488] sm:$0xff]
      %v481 = vld [vmem:[%s1 + $0x490] sm:$0xff]
      %v482 = vld [vmem:[%s1 + $0x498] sm:$0xff]
      %v483 = vld [vmem:[%s1 + $0x4a0] sm:$0xff]
      %v484 = vld [vmem:[%s1 + $0x4a8] sm:$0xff]
      %v485 = vld [vmem:[%s1 + $0x4b0] sm:$0xff]
      %v486 = vld [vmem:[%s1 + $0x4b8] sm:$0xff]
      %v487 = vld [vmem:[%s1 + $0x4c0] sm:$0xff]
      %v488 = vld [vmem:[%s1 + $0x4c8] sm:$0xff]
      %v489 = vld [vmem:[%s1 + $0x4d0] sm:$0xff]
      %v490 = vld [vmem:[%s1 + $0x4d8] sm:$0xff]
      %v491 = vld [vmem:[%s1 + $0x4e0] sm:$0xff]
      %v492 = vld [vmem:[%s1 + $0x4e8] sm:$0xff]
      %v493 = vld [vmem:[%s1 + $0x4f0] sm:$0xff]
      %v494 = vld [vmem:[%s1 + $0x4f8] sm:$0xff]
      %v495 = vld [vmem:[%s1 + $0x500] sm:$0xff]
      %v496 = vld [vmem:[%s1 + $0x508] sm:$0xff]
      %v497 = vld [vmem:[%s1 + $0x510] sm:$0xff]
      %v498 = vld [vmem:[%s1 + $0x518] sm:$0xff]
      %v499 = vld [vmem:[%s1 + $0x520] sm:$0xff]
      %v500 = vld [vmem:[%s1 + $0x528] sm:$0xff]
      %v501 = vld [vmem:[%s1 + $0x530] sm:$0xff]
      %v502 = vld [vmem:[%s1 + $0x538] sm:$0xff]
      %v587 = vunpack.c.l.b16 %v251
      %v588 = vunpack.c.h.b16 %v251
      %v589 = vunpack.c.l.b16 %v252
      %v590 = vunpack.c.h.b16 %v252
      %v591 = vunpack.c.l.b16 %v253
      %v592 = vunpack.c.h.b16 %v253
      %v593 = vunpack.c.l.b16 %v254
      %v594 = vunpack.c.h.b16 %v254
      %v595 = vunpack.c.l.b16 %v255
      %v596 = vunpack.c.h.b16 %v255
      %v597 = vunpack.c.l.b16 %v256
      %v598 = vunpack.c.l.b16 %v257
      %v599 = vunpack.c.h.b16 %v257
      %v600 = vunpack.c.l.b16 %v258
      %v601 = vunpack.c.h.b16 %v258
      %v602 = vunpack.c.l.b16 %v259
      %v603 = vunpack.c.h.b16 %v259
      %v604 = vunpack.c.l.b16 %v260
      %v605 = vunpack.c.h.b16 %v260
      %v606 = vunpack.c.l.b16 %v261
      %v607 = vunpack.c.h.b16 %v261
      %v608 = vunpack.c.l.b16 %v262
      %v609 = vunpack.c.l.b16 %v263
      %v610 = vunpack.c.h.b16 %v263
      %v611 = vunpack.c.l.b16 %v264
      %v612 = vunpack.c.h.b16 %v264
      %v613 = vunpack.c.l.b16 %v265
      %v614 = vunpack.c.h.b16 %v265
      %v615 = vunpack.c.l.b16 %v266
      %v616 = vunpack.c.h.b16 %v266
      %v617 = vunpack.c.l.b16 %v267
      %v618 = vunpack.c.h.b16 %v267
      %v619 = vunpack.c.l.b16 %v268
      %v620 = vunpack.c.l.b16 %v269
      %v621 = vunpack.c.h.b16 %v269
      %v622 = vunpack.c.l.b16 %v270
      %v623 = vunpack.c.h.b16 %v270
      %v624 = vunpack.c.l.b16 %v271
      %v625 = vunpack.c.h.b16 %v271
      %v626 = vunpack.c.l.b16 %v272
      %v627 = vunpack.c.h.b16 %v272
      %v628 = vunpack.c.l.b16 %v273
      %v629 = vunpack.c.h.b16 %v273
      %v630 = vunpack.c.l.b16 %v274
      %v631 = vunpack.c.l.b16 %v275
      %v632 = vunpack.c.h.b16 %v275
      %v633 = vunpack.c.l.b16 %v276
      %v634 = vunpack.c.h.b16 %v276
      %v635 = vunpack.c.l.b16 %v277
      %v636 = vunpack.c.h.b16 %v277
      %v637 = vunpack.c.l.b16 %v278
      %v638 = vunpack.c.h.b16 %v278
      %v639 = vunpack.c.l.b16 %v279
      %v640 = vunpack.c.h.b16 %v279
      %v641 = vunpack.c.l.b16 %v280
      %v642 = vunpack.c.l.b16 %v281
      %v643 = vunpack.c.h.b16 %v281
      %v644 = vunpack.c.l.b16 %v282
      %v645 = vunpack.c.h.b16 %v282
      %v646 = vunpack.c.l.b16 %v283
      %v647 = vunpack.c.h.b16 %v283
      %v648 = vunpack.c.l.b16 %v284
      %v649 = vunpack.c.h.b16 %v284
      %v650 = vunpack.c.l.b16 %v285
      %v651 = vunpack.c.h.b16 %v285
      %v652 = vunpack.c.l.b16 %v286
      %v653 = vunpack.c.l.b16 %v287
      %v654 = vunpack.c.h.b16 %v287
      %v655 = vunpack.c.l.b16 %v288
      %v656 = vunpack.c.h.b16 %v288
      %v657 = vunpack.c.l.b16 %v289
      %v658 = vunpack.c.h.b16 %v289
      %v659 = vunpack.c.l.b16 %v290
      %v660 = vunpack.c.h.b16 %v290
      %v661 = vunpack.c.l.b16 %v291
      %v662 = vunpack.c.h.b16 %v291
      %v663 = vunpack.c.l.b16 %v292
      %v664 = vunpack.c.l.b16 %v293
      %v665 = vunpack.c.h.b16 %v293
      %v666 = vunpack.c.l.b16 %v294
      %v667 = vunpack.c.h.b16 %v294
      %v668 = vunpack.c.l.b16 %v295
      %v669 = vunpack.c.h.b16 %v295
      %v670 = vunpack.c.l.b16 %v296
      %v671 = vunpack.c.h.b16 %v296
      %v672 = vunpack.c.l.b16 %v297
      %v673 = vunpack.c.h.b16 %v297
      %v674 = vunpack.c.l.b16 %v298
      %v675 = vunpack.c.l.b16 %v299
      %v676 = vunpack.c.h.b16 %v299
      %v677 = vunpack.c.l.b16 %v300
      %v678 = vunpack.c.h.b16 %v300
      %v679 = vunpack.c.l.b16 %v301
      %v680 = vunpack.c.h.b16 %v301
      %v681 = vunpack.c.l.b16 %v302
      %v682 = vunpack.c.h.b16 %v302
      %v683 = vunpack.c.l.b16 %v303
      %v684 = vunpack.c.h.b16 %v303
      %v685 = vunpack.c.l.b16 %v304
      %v686 = vunpack.c.l.b16 %v305
      %v687 = vunpack.c.h.b16 %v305
      %v688 = vunpack.c.l.b16 %v306
      %v689 = vunpack.c.h.b16 %v306
      %v690 = vunpack.c.l.b16 %v307
      %v691 = vunpack.c.h.b16 %v307
      %v692 = vunpack.c.l.b16 %v308
      %v693 = vunpack.c.h.b16 %v308
      %v694 = vunpack.c.l.b16 %v309
      %v695 = vunpack.c.h.b16 %v309
      %v696 = vunpack.c.l.b16 %v310
      %v697 = vunpack.c.l.b16 %v311
      %v698 = vunpack.c.h.b16 %v311
      %v699 = vunpack.c.l.b16 %v312
      %v700 = vunpack.c.h.b16 %v312
      %v701 = vunpack.c.l.b16 %v313
      %v702 = vunpack.c.h.b16 %v313
      %v703 = vunpack.c.l.b16 %v314
      %v704 = vunpack.c.h.b16 %v314
      %v705 = vunpack.c.l.b16 %v315
      %v706 = vunpack.c.h.b16 %v315
      %v707 = vunpack.c.l.b16 %v316
      %v708 = vunpack.c.l.b16 %v317
      %v709 = vunpack.c.h.b16 %v317
      %v710 = vunpack.c.l.b16 %v318
      %v711 = vunpack.c.h.b16 %v318
      %v712 = vunpack.c.l.b16 %v319
      %v713 = vunpack.c.h.b16 %v319
      %v714 = vunpack.c.l.b16 %v320
      %v715 = vunpack.c.h.b16 %v320
      %v716 = vunpack.c.l.b16 %v321
      %v717 = vunpack.c.h.b16 %v321
      %v718 = vunpack.c.l.b16 %v322
      %v719 = vunpack.c.l.b16 %v323
      %v720 = vunpack.c.h.b16 %v323
      %v721 = vunpack.c.l.b16 %v324
      %v722 = vunpack.c.h.b16 %v324
      %v723 = vunpack.c.l.b16 %v325
      %v724 = vunpack.c.h.b16 %v325
      %v725 = vunpack.c.l.b16 %v326
      %v726 = vunpack.c.h.b16 %v326
      %v727 = vunpack.c.l.b16 %v327
      %v728 = vunpack.c.h.b16 %v327
      %v729 = vunpack.c.l.b16 %v328
      %v730 = vunpack.c.l.b16 %v329
      %v731 = vunpack.c.h.b16 %v329
      %v732 = vunpack.c.l.b16 %v330
      %v733 = vunpack.c.h.b16 %v330
      %v734 = vunpack.c.l.b16 %v331
      %v735 = vunpack.c.h.b16 %v331
      %v736 = vunpack.c.l.b16 %v332
      %v737 = vunpack.c.h.b16 %v332
      %v738 = vunpack.c.l.b16 %v333
      %v739 = vunpack.c.h.b16 %v333
      %v740 = vunpack.c.l.b16 %v334
      %v741 = vpack.c.b16 %v598, %v587
      %v742 = vpack.c.b16 %v599, %v588
      %v743 = vpack.c.b16 %v600, %v589
      %v744 = vpack.c.b16 %v601, %v590
      %v745 = vpack.c.b16 %v602, %v591
      %v746 = vpack.c.b16 %v603, %v592
      %v747 = vpack.c.b16 %v604, %v593
      %v748 = vpack.c.b16 %v605, %v594
      %v749 = vpack.c.b16 %v606, %v595
      %v750 = vpack.c.b16 %v607, %v596
      %v751 = vpack.c.b16 %v608, %v597
      %v752 = vpack.c.b16 %v620, %v609
      %v753 = vpack.c.b16 %v621, %v610
      %v754 = vpack.c.b16 %v622, %v611
      %v755 = vpack.c.b16 %v623, %v612
      %v756 = vpack.c.b16 %v624, %v613
      %v757 = vpack.c.b16 %v625, %v614
      %v758 = vpack.c.b16 %v626, %v615
      %v759 = vpack.c.b16 %v627, %v616
      %v760 = vpack.c.b16 %v628, %v617
      %v761 = vpack.c.b16 %v629, %v618
      %v762 = vpack.c.b16 %v630, %v619
      %v763 = vpack.c.b16 %v642, %v631
      %v764 = vpack.c.b16 %v643, %v632
      %v765 = vpack.c.b16 %v644, %v633
      %v766 = vpack.c.b16 %v645, %v634
      %v767 = vpack.c.b16 %v646, %v635
      %v768 = vpack.c.b16 %v647, %v636
      %v769 = vpack.c.b16 %v648, %v637
      %v770 = vpack.c.b16 %v649, %v638
      %v771 = vpack.c.b16 %v650, %v639
      %v772 = vpack.c.b16 %v651, %v640
      %v773 = vpack.c.b16 %v652, %v641
      %v774 = vpack.c.b16 %v664, %v653
      %v775 = vpack.c.b16 %v665, %v654
      %v776 = vpack.c.b16 %v666, %v655
      %v777 = vpack.c.b16 %v667, %v656
      %v778 = vpack.c.b16 %v668, %v657
      %v779 = vpack.c.b16 %v669, %v658
      %v780 = vpack.c.b16 %v670, %v659
      %v781 = vpack.c.b16 %v671, %v660
      %v782 = vpack.c.b16 %v672, %v661
      %v783 = vpack.c.b16 %v673, %v662
      %v784 = vpack.c.b16 %v674, %v663
      %v785 = vpack.c.b16 %v686, %v675
      %v786 = vpack.c.b16 %v687, %v676
      %v787 = vpack.c.b16 %v688, %v677
      %v788 = vpack.c.b16 %v689, %v678
      %v789 = vpack.c.b16 %v690, %v679
      %v790 = vpack.c.b16 %v691, %v680
      %v791 = vpack.c.b16 %v692, %v681
      %v792 = vpack.c.b16 %v693, %v682
      %v793 = vpack.c.b16 %v694, %v683
      %v794 = vpack.c.b16 %v695, %v684
      %v795 = vpack.c.b16 %v696, %v685
      %v796 = vpack.c.b16 %v708, %v697
      %v797 = vpack.c.b16 %v709, %v698
      %v798 = vpack.c.b16 %v710, %v699
      %v799 = vpack.c.b16 %v711, %v700
      %v800 = vpack.c.b16 %v712, %v701
      %v801 = vpack.c.b16 %v713, %v702
      %v802 = vpack.c.b16 %v714, %v703
      %v803 = vpack.c.b16 %v715, %v704
      %v804 = vpack.c.b16 %v716, %v705
      %v805 = vpack.c.b16 %v717, %v706
      %v806 = vpack.c.b16 %v718, %v707
      %v807 = vpack.c.b16 %v730, %v719
      %v808 = vpack.c.b16 %v731, %v720
      %v809 = vpack.c.b16 %v732, %v721
      %v810 = vpack.c.b16 %v733, %v722
      %v811 = vpack.c.b16 %v734, %v723
      %v812 = vpack.c.b16 %v735, %v724
      %v813 = vpack.c.b16 %v736, %v725
      %v814 = vpack.c.b16 %v737, %v726
      %v815 = vpack.c.b16 %v738, %v727
      %v816 = vpack.c.b16 %v739, %v728
      %v817 = vpack.c.b16 %v740, %v729
      %v1056 = vunpack.c.l.b16 %v335
      %v1057 = vunpack.c.h.b16 %v335
      %v1058 = vunpack.c.l.b16 %v336
      %v1059 = vunpack.c.h.b16 %v336
      %v1060 = vunpack.c.l.b16 %v337
      %v1061 = vunpack.c.h.b16 %v337
      %v1062 = vunpack.c.l.b16 %v338
      %v1063 = vunpack.c.h.b16 %v338
      %v1064 = vunpack.c.l.b16 %v339
      %v1065 = vunpack.c.h.b16 %v339
      %v1066 = vunpack.c.l.b16 %v340
      %v1067 = vunpack.c.h.b16 %v340
      %v1068 = vunpack.c.l.b16 %v341
      %v1069 = vunpack.c.h.b16 %v341
      %v1070 = vunpack.c.l.b16 %v342
      %v1071 = vunpack.c.h.b16 %v342
      %v1072 = vunpack.c.l.b16 %v343
      %v1073 = vunpack.c.h.b16 %v343
      %v1074 = vunpack.c.l.b16 %v344
      %v1075 = vunpack.c.h.b16 %v344
      %v1076 = vunpack.c.l.b16 %v345
      %v1077 = vunpack.c.h.b16 %v345
      %v1078 = vunpack.c.l.b16 %v346
      %v1079 = vunpack.c.h.b16 %v346
      %v1080 = vunpack.c.l.b16 %v347
      %v1081 = vunpack.c.h.b16 %v347
      %v1082 = vunpack.c.l.b16 %v348
      %v1083 = vunpack.c.h.b16 %v348
      %v1084 = vunpack.c.l.b16 %v349
      %v1085 = vunpack.c.h.b16 %v349
      %v1086 = vunpack.c.l.b16 %v350
      %v1087 = vunpack.c.h.b16 %v350
      %v1088 = vunpack.c.l.b16 %v351
      %v1089 = vunpack.c.h.b16 %v351
      %v1090 = vunpack.c.l.b16 %v352
      %v1091 = vunpack.c.h.b16 %v352
      %v1092 = vunpack.c.l.b16 %v353
      %v1093 = vunpack.c.h.b16 %v353
      %v1094 = vunpack.c.l.b16 %v354
      %v1095 = vunpack.c.h.b16 %v354
      %v1096 = vunpack.c.l.b16 %v355
      %v1097 = vunpack.c.h.b16 %v355
      %v1098 = vunpack.c.l.b16 %v356
      %v1099 = vunpack.c.h.b16 %v356
      %v1100 = vunpack.c.l.b16 %v357
      %v1101 = vunpack.c.h.b16 %v357
      %v1102 = vunpack.c.l.b16 %v358
      %v1103 = vunpack.c.h.b16 %v358
      %v1104 = vunpack.c.l.b16 %v359
      %v1105 = vunpack.c.h.b16 %v359
      %v1106 = vunpack.c.l.b16 %v360
      %v1107 = vunpack.c.h.b16 %v360
      %v1108 = vunpack.c.l.b16 %v361
      %v1109 = vunpack.c.h.b16 %v361
      %v1110 = vunpack.c.l.b16 %v362
      %v1111 = vunpack.c.h.b16 %v362
      %v1112 = vunpack.c.l.b16 %v363
      %v1113 = vunpack.c.h.b16 %v363
      %v1114 = vunpack.c.l.b16 %v364
      %v1115 = vunpack.c.h.b16 %v364
      %v1116 = vunpack.c.l.b16 %v365
      %v1117 = vunpack.c.h.b16 %v365
      %v1118 = vunpack.c.l.b16 %v366
      %v1119 = vunpack.c.h.b16 %v366
      %v1120 = vunpack.c.l.b16 %v367
      %v1121 = vunpack.c.h.b16 %v367
      %v1122 = vunpack.c.l.b16 %v368
      %v1123 = vunpack.c.h.b16 %v368
      %v1124 = vunpack.c.l.b16 %v369
      %v1125 = vunpack.c.h.b16 %v369
      %v1126 = vunpack.c.l.b16 %v370
      %v1127 = vunpack.c.h.b16 %v370
      %v1128 = vunpack.c.l.b16 %v371
      %v1129 = vunpack.c.h.b16 %v371
      %v1130 = vunpack.c.l.b16 %v372
      %v1131 = vunpack.c.h.b16 %v372
      %v1132 = vunpack.c.l.b16 %v373
      %v1133 = vunpack.c.h.b16 %v373
      %v1134 = vunpack.c.l.b16 %v374
      %v1135 = vunpack.c.h.b16 %v374
      %v1136 = vunpack.c.l.b16 %v375
      %v1137 = vunpack.c.h.b16 %v375
      %v1138 = vunpack.c.l.b16 %v376
      %v1139 = vunpack.c.h.b16 %v376
      %v1140 = vunpack.c.l.b16 %v377
      %v1141 = vunpack.c.h.b16 %v377
      %v1142 = vunpack.c.l.b16 %v378
      %v1143 = vunpack.c.h.b16 %v378
      %v1144 = vunpack.c.l.b16 %v379
      %v1145 = vunpack.c.h.b16 %v379
      %v1146 = vunpack.c.l.b16 %v380
      %v1147 = vunpack.c.h.b16 %v380
      %v1148 = vunpack.c.l.b16 %v381
      %v1149 = vunpack.c.h.b16 %v381
      %v1150 = vunpack.c.l.b16 %v382
      %v1151 = vunpack.c.h.b16 %v382
      %v1152 = vunpack.c.l.b16 %v383
      %v1153 = vunpack.c.h.b16 %v383
      %v1154 = vunpack.c.l.b16 %v384
      %v1155 = vunpack.c.h.b16 %v384
      %v1156 = vunpack.c.l.b16 %v385
      %v1157 = vunpack.c.h.b16 %v385
      %v1158 = vunpack.c.l.b16 %v386
      %v1159 = vunpack.c.h.b16 %v386
      %v1160 = vunpack.c.l.b16 %v387
      %v1161 = vunpack.c.h.b16 %v387
      %v1162 = vunpack.c.l.b16 %v388
      %v1163 = vunpack.c.h.b16 %v388
      %v1164 = vunpack.c.l.b16 %v389
      %v1165 = vunpack.c.h.b16 %v389
      %v1166 = vunpack.c.l.b16 %v390
      %v1167 = vunpack.c.h.b16 %v390
      %v1168 = vunpack.c.l.b16 %v391
      %v1169 = vunpack.c.h.b16 %v391
      %v1170 = vunpack.c.l.b16 %v392
      %v1171 = vunpack.c.h.b16 %v392
      %v1172 = vunpack.c.l.b16 %v393
      %v1173 = vunpack.c.h.b16 %v393
      %v1174 = vunpack.c.l.b16 %v394
      %v1175 = vunpack.c.h.b16 %v394
      %v1176 = vunpack.c.l.b16 %v395
      %v1177 = vunpack.c.h.b16 %v395
      %v1178 = vunpack.c.l.b16 %v396
      %v1179 = vunpack.c.h.b16 %v396
      %v1180 = vunpack.c.l.b16 %v397
      %v1181 = vunpack.c.h.b16 %v397
      %v1182 = vunpack.c.l.b16 %v398
      %v1183 = vunpack.c.h.b16 %v398
      %v1184 = vunpack.c.l.b16 %v399
      %v1185 = vunpack.c.h.b16 %v399
      %v1186 = vunpack.c.l.b16 %v400
      %v1187 = vunpack.c.h.b16 %v400
      %v1188 = vunpack.c.l.b16 %v401
      %v1189 = vunpack.c.h.b16 %v401
      %v1190 = vunpack.c.l.b16 %v402
      %v1191 = vunpack.c.h.b16 %v402
      %v1192 = vunpack.c.l.b16 %v403
      %v1193 = vunpack.c.h.b16 %v403
      %v1194 = vunpack.c.l.b16 %v404
      %v1195 = vunpack.c.h.b16 %v404
      %v1196 = vunpack.c.l.b16 %v405
      %v1197 = vunpack.c.h.b16 %v405
      %v1198 = vunpack.c.l.b16 %v406
      %v1199 = vunpack.c.h.b16 %v406
      %v1200 = vunpack.c.l.b16 %v407
      %v1201 = vunpack.c.h.b16 %v407
      %v1202 = vunpack.c.l.b16 %v408
      %v1203 = vunpack.c.h.b16 %v408
      %v1204 = vunpack.c.l.b16 %v409
      %v1205 = vunpack.c.h.b16 %v409
      %v1206 = vunpack.c.l.b16 %v410
      %v1207 = vunpack.c.h.b16 %v410
      %v1208 = vunpack.c.l.b16 %v411
      %v1209 = vunpack.c.h.b16 %v411
      %v1210 = vunpack.c.l.b16 %v412
      %v1211 = vunpack.c.h.b16 %v412
      %v1212 = vunpack.c.l.b16 %v413
      %v1213 = vunpack.c.h.b16 %v413
      %v1214 = vunpack.c.l.b16 %v414
      %v1215 = vunpack.c.h.b16 %v414
      %v1216 = vunpack.c.l.b16 %v415
      %v1217 = vunpack.c.h.b16 %v415
      %v1218 = vunpack.c.l.b16 %v416
      %v1219 = vunpack.c.h.b16 %v416
      %v1220 = vunpack.c.l.b16 %v417
      %v1221 = vunpack.c.h.b16 %v417
      %v1222 = vunpack.c.l.b16 %v418
      %v1223 = vunpack.c.h.b16 %v418
      %v1224 = vunpack.c.l.b16 %v419
      %v1225 = vunpack.c.h.b16 %v419
      %v1226 = vunpack.c.l.b16 %v420
      %v1227 = vunpack.c.h.b16 %v420
      %v1228 = vunpack.c.l.b16 %v421
      %v1229 = vunpack.c.h.b16 %v421
      %v1230 = vunpack.c.l.b16 %v422
      %v1231 = vunpack.c.h.b16 %v422
      %v1232 = vunpack.c.l.b16 %v423
      %v1233 = vunpack.c.h.b16 %v423
      %v1234 = vunpack.c.l.b16 %v424
      %v1235 = vunpack.c.h.b16 %v424
      %v1236 = vunpack.c.l.b16 %v425
      %v1237 = vunpack.c.h.b16 %v425
      %v1238 = vunpack.c.l.b16 %v426
      %v1239 = vunpack.c.h.b16 %v426
      %v1240 = vunpack.c.l.b16 %v427
      %v1241 = vunpack.c.h.b16 %v427
      %v1242 = vunpack.c.l.b16 %v428
      %v1243 = vunpack.c.h.b16 %v428
      %v1244 = vunpack.c.l.b16 %v429
      %v1245 = vunpack.c.h.b16 %v429
      %v1246 = vunpack.c.l.b16 %v430
      %v1247 = vunpack.c.h.b16 %v430
      %v1248 = vunpack.c.l.b16 %v431
      %v1249 = vunpack.c.h.b16 %v431
      %v1250 = vunpack.c.l.b16 %v432
      %v1251 = vunpack.c.h.b16 %v432
      %v1252 = vunpack.c.l.b16 %v433
      %v1253 = vunpack.c.h.b16 %v433
      %v1254 = vunpack.c.l.b16 %v434
      %v1255 = vunpack.c.h.b16 %v434
      %v1256 = vunpack.c.l.b16 %v435
      %v1257 = vunpack.c.h.b16 %v435
      %v1258 = vunpack.c.l.b16 %v436
      %v1259 = vunpack.c.h.b16 %v436
      %v1260 = vunpack.c.l.b16 %v437
      %v1261 = vunpack.c.h.b16 %v437
      %v1262 = vunpack.c.l.b16 %v438
      %v1263 = vunpack.c.h.b16 %v438
      %v1264 = vunpack.c.l.b16 %v439
      %v1265 = vunpack.c.h.b16 %v439
      %v1266 = vunpack.c.l.b16 %v440
      %v1267 = vunpack.c.h.b16 %v440
      %v1268 = vunpack.c.l.b16 %v441
      %v1269 = vunpack.c.h.b16 %v441
      %v1270 = vunpack.c.l.b16 %v442
      %v1271 = vunpack.c.h.b16 %v442
      %v1272 = vunpack.c.l.b16 %v443
      %v1273 = vunpack.c.h.b16 %v443
      %v1274 = vunpack.c.l.b16 %v444
      %v1275 = vunpack.c.h.b16 %v444
      %v1276 = vunpack.c.l.b16 %v445
      %v1277 = vunpack.c.h.b16 %v445
      %v1278 = vunpack.c.l.b16 %v446
      %v1279 = vunpack.c.h.b16 %v446
      %v1280 = vunpack.c.l.b16 %v447
      %v1281 = vunpack.c.h.b16 %v447
      %v1282 = vunpack.c.l.b16 %v448
      %v1283 = vunpack.c.h.b16 %v448
      %v1284 = vunpack.c.l.b16 %v449
      %v1285 = vunpack.c.h.b16 %v449
      %v1286 = vunpack.c.l.b16 %v450
      %v1287 = vunpack.c.h.b16 %v450
      %v1288 = vunpack.c.l.b16 %v451
      %v1289 = vunpack.c.h.b16 %v451
      %v1290 = vunpack.c.l.b16 %v452
      %v1291 = vunpack.c.h.b16 %v452
      %v1292 = vunpack.c.l.b16 %v453
      %v1293 = vunpack.c.h.b16 %v453
      %v1294 = vunpack.c.l.b16 %v454
      %v1295 = vunpack.c.h.b16 %v454
      %v1296 = vunpack.c.l.b16 %v455
      %v1297 = vunpack.c.h.b16 %v455
      %v1298 = vunpack.c.l.b16 %v456
      %v1299 = vunpack.c.h.b16 %v456
      %v1300 = vunpack.c.l.b16 %v457
      %v1301 = vunpack.c.h.b16 %v457
      %v1302 = vunpack.c.l.b16 %v458
      %v1303 = vunpack.c.h.b16 %v458
      %v1304 = vunpack.c.l.b16 %v459
      %v1305 = vunpack.c.h.b16 %v459
      %v1306 = vunpack.c.l.b16 %v460
      %v1307 = vunpack.c.h.b16 %v460
      %v1308 = vunpack.c.l.b16 %v461
      %v1309 = vunpack.c.h.b16 %v461
      %v1310 = vunpack.c.l.b16 %v462
      %v1311 = vunpack.c.h.b16 %v462
      %v1312 = vunpack.c.l.b16 %v463
      %v1313 = vunpack.c.h.b16 %v463
      %v1314 = vunpack.c.l.b16 %v464
      %v1315 = vunpack.c.h.b16 %v464
      %v1316 = vunpack.c.l.b16 %v465
      %v1317 = vunpack.c.h.b16 %v465
      %v1318 = vunpack.c.l.b16 %v466
      %v1319 = vunpack.c.h.b16 %v466
      %v1320 = vunpack.c.l.b16 %v467
      %v1321 = vunpack.c.h.b16 %v467
      %v1322 = vunpack.c.l.b16 %v468
      %v1323 = vunpack.c.h.b16 %v468
      %v1324 = vunpack.c.l.b16 %v469
      %v1325 = vunpack.c.h.b16 %v469
      %v1326 = vunpack.c.l.b16 %v470
      %v1327 = vunpack.c.h.b16 %v470
      %v1328 = vunpack.c.l.b16 %v471
      %v1329 = vunpack.c.h.b16 %v471
      %v1330 = vunpack.c.l.b16 %v472
      %v1331 = vunpack.c.h.b16 %v472
      %v1332 = vunpack.c.l.b16 %v473
      %v1333 = vunpack.c.h.b16 %v473
      %v1334 = vunpack.c.l.b16 %v474
      %v1335 = vunpack.c.h.b16 %v474
      %v1336 = vunpack.c.l.b16 %v475
      %v1337 = vunpack.c.h.b16 %v475
      %v1338 = vunpack.c.l.b16 %v476
      %v1339 = vunpack.c.h.b16 %v476
      %v1340 = vunpack.c.l.b16 %v477
      %v1341 = vunpack.c.h.b16 %v477
      %v1342 = vunpack.c.l.b16 %v478
      %v1343 = vunpack.c.h.b16 %v478
      %v1344 = vunpack.c.l.b16 %v479
      %v1345 = vunpack.c.h.b16 %v479
      %v1346 = vunpack.c.l.b16 %v480
      %v1347 = vunpack.c.h.b16 %v480
      %v1348 = vunpack.c.l.b16 %v481
      %v1349 = vunpack.c.h.b16 %v481
      %v1350 = vunpack.c.l.b16 %v482
      %v1351 = vunpack.c.h.b16 %v482
      %v1352 = vunpack.c.l.b16 %v483
      %v1353 = vunpack.c.h.b16 %v483
      %v1354 = vunpack.c.l.b16 %v484
      %v1355 = vunpack.c.h.b16 %v484
      %v1356 = vunpack.c.l.b16 %v485
      %v1357 = vunpack.c.h.b16 %v485
      %v1358 = vunpack.c.l.b16 %v486
      %v1359 = vunpack.c.h.b16 %v486
      %v1360 = vunpack.c.l.b16 %v487
      %v1361 = vunpack.c.h.b16 %v487
      %v1362 = vunpack.c.l.b16 %v488
      %v1363 = vunpack.c.h.b16 %v488
      %v1364 = vunpack.c.l.b16 %v489
      %v1365 = vunpack.c.h.b16 %v489
      %v1366 = vunpack.c.l.b16 %v490
      %v1367 = vunpack.c.h.b16 %v490
      %v1368 = vunpack.c.l.b16 %v491
      %v1369 = vunpack.c.h.b16 %v491
      %v1370 = vunpack.c.l.b16 %v492
      %v1371 = vunpack.c.h.b16 %v492
      %v1372 = vunpack.c.l.b16 %v493
      %v1373 = vunpack.c.h.b16 %v493
      %v1374 = vunpack.c.l.b16 %v494
      %v1375 = vunpack.c.h.b16 %v494
      %v1376 = vunpack.c.l.b16 %v495
      %v1377 = vunpack.c.h.b16 %v495
      %v1378 = vunpack.c.l.b16 %v496
      %v1379 = vunpack.c.h.b16 %v496
      %v1380 = vunpack.c.l.b16 %v497
      %v1381 = vunpack.c.h.b16 %v497
      %v1382 = vunpack.c.l.b16 %v498
      %v1383 = vunpack.c.h.b16 %v498
      %v1384 = vunpack.c.l.b16 %v499
      %v1385 = vunpack.c.h.b16 %v499
      %v1386 = vunpack.c.l.b16 %v500
      %v1387 = vunpack.c.h.b16 %v500
      %v1388 = vunpack.c.l.b16 %v501
      %v1389 = vunpack.c.h.b16 %v501
      %v1390 = vunpack.c.l.b16 %v502
      %v1391 = vunpack.c.h.b16 %v502
      %v1392 = vpack.c.b16 %v1058, %v1056
      %v1393 = vpack.c.b16 %v1059, %v1057
      %v1394 = vpack.c.b16 %v1062, %v1060
      %v1395 = vpack.c.b16 %v1063, %v1061
      %v1396 = vpack.c.b16 %v1066, %v1064
      %v1397 = vpack.c.b16 %v1067, %v1065
      %v1398 = vpack.c.b16 %v1070, %v1068
      %v1399 = vpack.c.b16 %v1071, %v1069
      %v1400 = vpack.c.b16 %v1074, %v1072
      %v1401 = vpack.c.b16 %v1075, %v1073
      %v1402 = vpack.c.b16 %v1078, %v1076
      %v1403 = vpack.c.b16 %v1079, %v1077
      %v1404 = vpack.c.b16 %v1082, %v1080
      %v1405 = vpack.c.b16 %v1083, %v1081
      %v1406 = vpack.c.b16 %v1086, %v1084
      %v1407 = vpack.c.b16 %v1087, %v1085
      %v1408 = vpack.c.b16 %v1090, %v1088
      %v1409 = vpack.c.b16 %v1091, %v1089
      %v1410 = vpack.c.b16 %v1094, %v1092
      %v1411 = vpack.c.b16 %v1095, %v1093
      %v1412 = vpack.c.b16 %v1098, %v1096
      %v1413 = vpack.c.b16 %v1099, %v1097
      %v1414 = vpack.c.b16 %v1102, %v1100
      %v1415 = vpack.c.b16 %v1103, %v1101
      %v1416 = vpack.c.b16 %v1106, %v1104
      %v1417 = vpack.c.b16 %v1107, %v1105
      %v1418 = vpack.c.b16 %v1110, %v1108
      %v1419 = vpack.c.b16 %v1111, %v1109
      %v1420 = vpack.c.b16 %v1114, %v1112
      %v1421 = vpack.c.b16 %v1115, %v1113
      %v1422 = vpack.c.b16 %v1118, %v1116
      %v1423 = vpack.c.b16 %v1119, %v1117
      %v1424 = vpack.c.b16 %v1122, %v1120
      %v1425 = vpack.c.b16 %v1123, %v1121
      %v1426 = vpack.c.b16 %v1126, %v1124
      %v1427 = vpack.c.b16 %v1127, %v1125
      %v1428 = vpack.c.b16 %v1130, %v1128
      %v1429 = vpack.c.b16 %v1131, %v1129
      %v1430 = vpack.c.b16 %v1134, %v1132
      %v1431 = vpack.c.b16 %v1135, %v1133
      %v1432 = vpack.c.b16 %v1138, %v1136
      %v1433 = vpack.c.b16 %v1139, %v1137
      %v1434 = vpack.c.b16 %v1142, %v1140
      %v1435 = vpack.c.b16 %v1143, %v1141
      %v1436 = vpack.c.b16 %v1146, %v1144
      %v1437 = vpack.c.b16 %v1147, %v1145
      %v1438 = vpack.c.b16 %v1150, %v1148
      %v1439 = vpack.c.b16 %v1151, %v1149
      %v1440 = vpack.c.b16 %v1154, %v1152
      %v1441 = vpack.c.b16 %v1155, %v1153
      %v1442 = vpack.c.b16 %v1158, %v1156
      %v1443 = vpack.c.b16 %v1159, %v1157
      %v1444 = vpack.c.b16 %v1162, %v1160
      %v1445 = vpack.c.b16 %v1163, %v1161
      %v1446 = vpack.c.b16 %v1166, %v1164
      %v1447 = vpack.c.b16 %v1167, %v1165
      %v1448 = vpack.c.b16 %v1170, %v1168
      %v1449 = vpack.c.b16 %v1171, %v1169
      %v1450 = vpack.c.b16 %v1174, %v1172
      %v1451 = vpack.c.b16 %v1175, %v1173
      %v1452 = vpack.c.b16 %v1178, %v1176
      %v1453 = vpack.c.b16 %v1179, %v1177
      %v1454 = vpack.c.b16 %v1182, %v1180
      %v1455 = vpack.c.b16 %v1183, %v1181
      %v1456 = vpack.c.b16 %v1186, %v1184
      %v1457 = vpack.c.b16 %v1187, %v1185
      %v1458 = vpack.c.b16 %v1190, %v1188
      %v1459 = vpack.c.b16 %v1191, %v1189
      %v1460 = vpack.c.b16 %v1194, %v1192
      %v1461 = vpack.c.b16 %v1195, %v1193
      %v1462 = vpack.c.b16 %v1198, %v1196
      %v1463 = vpack.c.b16 %v1199, %v1197
      %v1464 = vpack.c.b16 %v1202, %v1200
      %v1465 = vpack.c.b16 %v1203, %v1201
      %v1466 = vpack.c.b16 %v1206, %v1204
      %v1467 = vpack.c.b16 %v1207, %v1205
      %v1468 = vpack.c.b16 %v1210, %v1208
      %v1469 = vpack.c.b16 %v1211, %v1209
      %v1470 = vpack.c.b16 %v1214, %v1212
      %v1471 = vpack.c.b16 %v1215, %v1213
      %v1472 = vpack.c.b16 %v1218, %v1216
      %v1473 = vpack.c.b16 %v1219, %v1217
      %v1474 = vpack.c.b16 %v1222, %v1220
      %v1475 = vpack.c.b16 %v1223, %v1221
      %v1476 = vpack.c.b16 %v1226, %v1224
      %v1477 = vpack.c.b16 %v1227, %v1225
      %v1478 = vpack.c.b16 %v1230, %v1228
      %v1479 = vpack.c.b16 %v1231, %v1229
      %v1480 = vpack.c.b16 %v1234, %v1232
      %v1481 = vpack.c.b16 %v1235, %v1233
      %v1482 = vpack.c.b16 %v1238, %v1236
      %v1483 = vpack.c.b16 %v1239, %v1237
      %v1484 = vpack.c.b16 %v1242, %v1240
      %v1485 = vpack.c.b16 %v1243, %v1241
      %v1486 = vpack.c.b16 %v1246, %v1244
      %v1487 = vpack.c.b16 %v1247, %v1245
      %v1488 = vpack.c.b16 %v1250, %v1248
      %v1489 = vpack.c.b16 %v1251, %v1249
      %v1490 = vpack.c.b16 %v1254, %v1252
      %v1491 = vpack.c.b16 %v1255, %v1253
      %v1492 = vpack.c.b16 %v1258, %v1256
      %v1493 = vpack.c.b16 %v1259, %v1257
      %v1494 = vpack.c.b16 %v1262, %v1260
      %v1495 = vpack.c.b16 %v1263, %v1261
      %v1496 = vpack.c.b16 %v1266, %v1264
      %v1497 = vpack.c.b16 %v1267, %v1265
      %v1498 = vpack.c.b16 %v1270, %v1268
      %v1499 = vpack.c.b16 %v1271, %v1269
      %v1500 = vpack.c.b16 %v1274, %v1272
      %v1501 = vpack.c.b16 %v1275, %v1273
      %v1502 = vpack.c.b16 %v1278, %v1276
      %v1503 = vpack.c.b16 %v1279, %v1277
      %v1504 = vpack.c.b16 %v1282, %v1280
      %v1505 = vpack.c.b16 %v1283, %v1281
      %v1506 = vpack.c.b16 %v1286, %v1284
      %v1507 = vpack.c.b16 %v1287, %v1285
      %v1508 = vpack.c.b16 %v1290, %v1288
      %v1509 = vpack.c.b16 %v1291, %v1289
      %v1510 = vpack.c.b16 %v1294, %v1292
      %v1511 = vpack.c.b16 %v1295, %v1293
      %v1512 = vpack.c.b16 %v1298, %v1296
      %v1513 = vpack.c.b16 %v1299, %v1297
      %v1514 = vpack.c.b16 %v1302, %v1300
      %v1515 = vpack.c.b16 %v1303, %v1301
      %v1516 = vpack.c.b16 %v1306, %v1304
      %v1517 = vpack.c.b16 %v1307, %v1305
      %v1518 = vpack.c.b16 %v1310, %v1308
      %v1519 = vpack.c.b16 %v1311, %v1309
      %v1520 = vpack.c.b16 %v1314, %v1312
      %v1521 = vpack.c.b16 %v1315, %v1313
      %v1522 = vpack.c.b16 %v1318, %v1316
      %v1523 = vpack.c.b16 %v1319, %v1317
      %v1524 = vpack.c.b16 %v1322, %v1320
      %v1525 = vpack.c.b16 %v1323, %v1321
      %v1526 = vpack.c.b16 %v1326, %v1324
      %v1527 = vpack.c.b16 %v1327, %v1325
      %v1528 = vpack.c.b16 %v1330, %v1328
      %v1529 = vpack.c.b16 %v1331, %v1329
      %v1530 = vpack.c.b16 %v1334, %v1332
      %v1531 = vpack.c.b16 %v1335, %v1333
      %v1532 = vpack.c.b16 %v1338, %v1336
      %v1533 = vpack.c.b16 %v1339, %v1337
      %v1534 = vpack.c.b16 %v1342, %v1340
      %v1535 = vpack.c.b16 %v1343, %v1341
      %v1536 = vpack.c.b16 %v1346, %v1344
      %v1537 = vpack.c.b16 %v1347, %v1345
      %v1538 = vpack.c.b16 %v1350, %v1348
      %v1539 = vpack.c.b16 %v1351, %v1349
      %v1540 = vpack.c.b16 %v1354, %v1352
      %v1541 = vpack.c.b16 %v1355, %v1353
      %v1542 = vpack.c.b16 %v1358, %v1356
      %v1543 = vpack.c.b16 %v1359, %v1357
      %v1544 = vpack.c.b16 %v1362, %v1360
      %v1545 = vpack.c.b16 %v1363, %v1361
      %v1546 = vpack.c.b16 %v1366, %v1364
      %v1547 = vpack.c.b16 %v1367, %v1365
      %v1548 = vpack.c.b16 %v1370, %v1368
      %v1549 = vpack.c.b16 %v1371, %v1369
      %v1550 = vpack.c.b16 %v1374, %v1372
      %v1551 = vpack.c.b16 %v1375, %v1373
      %v1552 = vpack.c.b16 %v1378, %v1376
      %v1553 = vpack.c.b16 %v1379, %v1377
      %v1554 = vpack.c.b16 %v1382, %v1380
      %v1555 = vpack.c.b16 %v1383, %v1381
      %v1556 = vpack.c.b16 %v1386, %v1384
      %v1557 = vpack.c.b16 %v1387, %v1385
      %v1558 = vpack.c.b16 %v1390, %v1388
      %v1559 = vpack.c.b16 %v1391, %v1389
      %vm1728 = vcmask 523264
      %v1730 = vsel %vm1728, %v751, 0
      %v1733 = vsel %vm1728, %v762, 0
      %v1736 = vsel %vm1728, %v773, 0
      %v1739 = vsel %vm1728, %v784, 0
      %v1742 = vsel %vm1728, %v795, 0
      %v1745 = vsel %vm1728, %v806, 0
      %v1748 = vsel %vm1728, %v817, 0
      %1750 = vmatprep.subr.bf16.mxu0 %v1393
      %1751 = vmatpush1.bf16.msra.mxu0 %v1392
      %1752 = vmatprep.subr.bf16.mxu0 %v1395
      %1753 = vmatpush1.bf16.msra.mxu0 %v1394
      %1754 = vmatprep.subr.bf16.mxu0 %v1397
      %1755 = vmatpush1.bf16.msra.mxu0 %v1396
      %1756 = vmatprep.subr.bf16.mxu0 %v1399
      %1757 = vmatpush1.bf16.msra.mxu0 %v1398
      %1758 = vmatprep.subr.bf16.mxu0 %v1401
      %1759 = vmatpush1.bf16.msra.mxu0 %v1400
      %1760 = vmatprep.subr.bf16.mxu0 %v1403
      %1761 = vmatpush1.bf16.msra.mxu0 %v1402
      %1762 = vmatprep.subr.bf16.mxu0 %v1405
      %1763 = vmatpush1.bf16.msra.mxu0 %v1404
      %1764 = vmatprep.subr.bf16.mxu0 %v1407
      %1765 = vmatpush1.bf16.msra.mxu0 %v1406
      %1766 = vmatprep.subr.bf16.mxu0 %v1409
      %1767 = vmatpush1.bf16.msra.mxu0 %v1408
      %1768 = vmatprep.subr.bf16.mxu0 %v1411
      %1769 = vmatpush1.bf16.msra.mxu0 %v1410
      %1770 = vmatprep.subr.bf16.mxu0 %v1413
      %1771 = vmatpush1.bf16.msra.mxu0 %v1412
      %1772 = vmatprep.subr.bf16.mxu0 %v1415
      %1773 = vmatpush1.bf16.msra.mxu0 %v1414
      %1774 = vmatprep.subr.bf16.mxu0 %v1417
      %1775 = vmatpush1.bf16.msra.mxu0 %v1416
      %1776 = vmatprep.subr.bf16.mxu0 %v1419
      %1777 = vmatpush1.bf16.msra.mxu0 %v1418
      %1778 = vmatprep.subr.bf16.mxu0 %v1421
      %1779 = vmatpush1.bf16.msra.mxu0 %v1420
      %1780 = vmatprep.subr.bf16.mxu0 %v1423
      %1781 = vmatpush1.bf16.msra.mxu0 %v1422
      %1782 = vmatprep.mubr.bf16.mxu0 %v742
      %1783 = vmatmul.mubr.bf16.gmra.mrb[0].mxu0 %v741
      %v1784 = vpop.f32.mrb[0].mxu0
      %v1785 = vadd.f32 0.0, %v1784
      %v1786 = vpop.f32.mrb[0].mxu0
      %v1787 = vadd.f32 0.0, %v1786
      %v1788 = vpop.f32.mrb[0].mxu0
      %v1789 = vadd.f32 0.0, %v1788
      %v1790 = vpop.f32.mrb[0].mxu0
      %v1791 = vadd.f32 0.0, %v1790
      %1792 = vmatprep.mubr.bf16.mxu0 %v753
      %1793 = vmatmul.mubr.bf16.gmra.mrb[0].mxu0 %v752
      %v1794 = vpop.f32.mrb[0].mxu0
      %v1795 = vadd.f32 0.0, %v1794
      %v1796 = vpop.f32.mrb[0].mxu0
      %v1797 = vadd.f32 0.0, %v1796
      %v1798 = vpop.f32.mrb[0].mxu0
      %v1799 = vadd.f32 0.0, %v1798
      %v1800 = vpop.f32.mrb[0].mxu0
      %v1801 = vadd.f32 0.0, %v1800
      %1802 = vmatprep.mubr.bf16.mxu0 %v764
      %1803 = vmatmul.mubr.bf16.gmra.mrb[0].mxu0 %v763
      %v1804 = vpop.f32.mrb[0].mxu0
      %v1805 = vadd.f32 0.0, %v1804
      %v1806 = vpop.f32.mrb[0].mxu0
      %v1807 = vadd.f32 0.0, %v1806
      %v1808 = vpop.f32.mrb[0].mxu0
      %v1809 = vadd.f32 0.0, %v1808
      %v1810 = vpop.f32.mrb[0].mxu0
      %v1811 = vadd.f32 0.0, %v1810
      %1812 = vmatprep.mubr.bf16.mxu0 %v775
      %1813 = vmatmul.mubr.bf16.gmra.mrb[0].mxu0 %v774
      %v1814 = vpop.f32.mrb[0].mxu0
      %v1815 = vadd.f32 0.0, %v1814
      %v1816 = vpop.f32.mrb[0].mxu0
      %v1817 = vadd.f32 0.0, %v1816
      %v1818 = vpop.f32.mrb[0].mxu0
      %v1819 = vadd.f32 0.0, %v1818
      %v1820 = vpop.f32.mrb[0].mxu0
      %v1821 = vadd.f32 0.0, %v1820
      %1822 = vmatprep.mubr.bf16.mxu0 %v786
      %1823 = vmatmul.mubr.bf16.gmra.mrb[0].mxu0 %v785
      %v1824 = vpop.f32.mrb[0].mxu0
      %v1825 = vadd.f32 0.0, %v1824
      %v1826 = vpop.f32.mrb[0].mxu0
      %v1827 = vadd.f32 0.0, %v1826
      %v1828 = vpop.f32.mrb[0].mxu0
      %v1829 = vadd.f32 0.0, %v1828
      %v1830 = vpop.f32.mrb[0].mxu0
      %v1831 = vadd.f32 0.0, %v1830
      %1832 = vmatprep.mubr.bf16.mxu0 %v797
      %1833 = vmatmul.mubr.bf16.gmra.mrb[0].mxu0 %v796
      %v1834 = vpop.f32.mrb[0].mxu0
      %v1835 = vadd.f32 0.0, %v1834
      %v1836 = vpop.f32.mrb[0].mxu0
      %v1837 = vadd.f32 0.0, %v1836
      %v1838 = vpop.f32.mrb[0].mxu0
      %v1839 = vadd.f32 0.0, %v1838
      %v1840 = vpop.f32.mrb[0].mxu0
      %v1841 = vadd.f32 0.0, %v1840
      %1842 = vmatprep.mubr.bf16.mxu0 %v808
      %1843 = vmatmul.mubr.bf16.gmra.mrb[0].mxu0 %v807
      %v1844 = vpop.f32.mrb[0].mxu0
      %v1845 = vadd.f32 0.0, %v1844
      %v1846 = vpop.f32.mrb[0].mxu0
      %v1847 = vadd.f32 0.0, %v1846
      %v1848 = vpop.f32.mrb[0].mxu0
      %v1849 = vadd.f32 0.0, %v1848
      %v1850 = vpop.f32.mrb[0].mxu0
      %v1851 = vadd.f32 0.0, %v1850
      %1852 = vdwg.mxu0
      %1853 = vmatprep.subr.bf16.mxu0 %v1425
      %1854 = vmatpush1.bf16.msra.mxu0 %v1424
      %1855 = vmatprep.subr.bf16.mxu0 %v1427
      %1856 = vmatpush1.bf16.msra.mxu0 %v1426
      %1857 = vmatprep.subr.bf16.mxu0 %v1429
      %1858 = vmatpush1.bf16.msra.mxu0 %v1428
      %1859 = vmatprep.subr.bf16.mxu0 %v1431
      %1860 = vmatpush1.bf16.msra.mxu0 %v1430
      %1861 = vmatprep.subr.bf16.mxu0 %v1433
      %1862 = vmatpush1.bf16.msra.mxu0 %v1432
      %1863 = vmatprep.subr.bf16.mxu0 %v1435
      %1864 = vmatpush1.bf16.msra.mxu0 %v1434
      %1865 = vmatprep.subr.bf16.mxu0 %v1437
      %1866 = vmatpush1.bf16.msra.mxu0 %v1436
      %1867 = vmatprep.subr.bf16.mxu0 %v1439
      %1868 = vmatpush1.bf16.msra.mxu0 %v1438
      %1869 = vmatprep.subr.bf16.mxu0 %v1441
      %1870 = vmatpush1.bf16.msra.mxu0 %v1440
      %1871 = vmatprep.subr.bf16.mxu0 %v1443
      %1872 = vmatpush1.bf16.msra.mxu0 %v1442
      %1873 = vmatprep.subr.bf16.mxu0 %v1445
      %1874 = vmatpush1.bf16.msra.mxu0 %v1444
      %1875 = vmatprep.subr.bf16.mxu0 %v1447
      %1876 = vmatpush1.bf16.msra.mxu0 %v1446
      %1877 = vmatprep.subr.bf16.mxu0 %v1449
      %1878 = vmatpush1.bf16.msra.mxu0 %v1448
      %1879 = vmatprep.subr.bf16.mxu0 %v1451
      %1880 = vmatpush1.bf16.msra.mxu0 %v1450
      %1881 = vmatprep.subr.bf16.mxu0 %v1453
      %1882 = vmatpush1.bf16.msra.mxu0 %v1452
      %1883 = vmatprep.subr.bf16.mxu0 %v1455
      %1884 = vmatpush1.bf16.msra.mxu0 %v1454
      %1885 = vmatprep.mubr.bf16.mxu0 %v744
      %1886 = vmatmul.mubr.bf16.gmra.mrb[0].mxu0 %v743
      %v1887 = vpop.f32.mrb[0].mxu0
      %v1888 = vadd.f32 %v1785, %v1887
      %v1889 = vpop.f32.mrb[0].mxu0
      %v1890 = vadd.f32 %v1787, %v1889
      %v1891 = vpop.f32.mrb[0].mxu0
      %v1892 = vadd.f32 %v1789, %v1891
      %v1893 = vpop.f32.mrb[0].mxu0
      %v1894 = vadd.f32 %v1791, %v1893
      %1895 = vmatprep.mubr.bf16.mxu0 %v755
      %1896 = vmatmul.mubr.bf16.gmra.mrb[0].mxu0 %v754
      %v1897 = vpop.f32.mrb[0].mxu0
      %v1898 = vadd.f32 %v1795, %v1897
      %v1899 = vpop.f32.mrb[0].mxu0
      %v1900 = vadd.f32 %v1797, %v1899
      %v1901 = vpop.f32.mrb[0].mxu0
      %v1902 = vadd.f32 %v1799, %v1901
      %v1903 = vpop.f32.mrb[0].mxu0
      %v1904 = vadd.f32 %v1801, %v1903
      %1905 = vmatprep.mubr.bf16.mxu0 %v766
      %1906 = vmatmul.mubr.bf16.gmra.mrb[0].mxu0 %v765
      %v1907 = vpop.f32.mrb[0].mxu0
      %v1908 = vadd.f32 %v1805, %v1907
      %v1909 = vpop.f32.mrb[0].mxu0
      %v1910 = vadd.f32 %v1807, %v1909
      %v1911 = vpop.f32.mrb[0].mxu0
      %v1912 = vadd.f32 %v1809, %v1911
      %v1913 = vpop.f32.mrb[0].mxu0
      %v1914 = vadd.f32 %v1811, %v1913
      %1915 = vmatprep.mubr.bf16.mxu0 %v777
      %1916 = vmatmul.mubr.bf16.gmra.mrb[0].mxu0 %v776
      %v1917 = vpop.f32.mrb[0].mxu0
      %v1918 = vadd.f32 %v1815, %v1917
      %v1919 = vpop.f32.mrb[0].mxu0
      %v1920 = vadd.f32 %v1817, %v1919
      %v1921 = vpop.f32.mrb[0].mxu0
      %v1922 = vadd.f32 %v1819, %v1921
      %v1923 = vpop.f32.mrb[0].mxu0
      %v1924 = vadd.f32 %v1821, %v1923
      %1925 = vmatprep.mubr.bf16.mxu0 %v788
      %1926 = vmatmul.mubr.bf16.gmra.mrb[0].mxu0 %v787
      %v1927 = vpop.f32.mrb[0].mxu0
      %v1928 = vadd.f32 %v1825, %v1927
      %v1929 = vpop.f32.mrb[0].mxu0
      %v1930 = vadd.f32 %v1827, %v1929
      %v1931 = vpop.f32.mrb[0].mxu0
      %v1932 = vadd.f32 %v1829, %v1931
      %v1933 = vpop.f32.mrb[0].mxu0
      %v1934 = vadd.f32 %v1831, %v1933
      %1935 = vmatprep.mubr.bf16.mxu0 %v799
      %1936 = vmatmul.mubr.bf16.gmra.mrb[0].mxu0 %v798
      %v1937 = vpop.f32.mrb[0].mxu0
      %v1938 = vadd.f32 %v1835, %v1937
      %v1939 = vpop.f32.mrb[0].mxu0
      %v1940 = vadd.f32 %v1837, %v1939
      %v1941 = vpop.f32.mrb[0].mxu0
      %v1942 = vadd.f32 %v1839, %v1941
      %v1943 = vpop.f32.mrb[0].mxu0
      %v1944 = vadd.f32 %v1841, %v1943
      %1945 = vmatprep.mubr.bf16.mxu0 %v810
      %1946 = vmatmul.mubr.bf16.gmra.mrb[0].mxu0 %v809
      %v1947 = vpop.f32.mrb[0].mxu0
      %v1948 = vadd.f32 %v1845, %v1947
      %v1949 = vpop.f32.mrb[0].mxu0
      %v1950 = vadd.f32 %v1847, %v1949
      %v1951 = vpop.f32.mrb[0].mxu0
      %v1952 = vadd.f32 %v1849, %v1951
      %v1953 = vpop.f32.mrb[0].mxu0
      %v1954 = vadd.f32 %v1851, %v1953
      %1955 = vdwg.mxu0
      %1956 = vmatprep.subr.bf16.mxu0 %v1457
      %1957 = vmatpush1.bf16.msra.mxu0 %v1456
      %1958 = vmatprep.subr.bf16.mxu0 %v1459
      %1959 = vmatpush1.bf16.msra.mxu0 %v1458
      %1960 = vmatprep.subr.bf16.mxu0 %v1461
      %1961 = vmatpush1.bf16.msra.mxu0 %v1460
      %1962 = vmatprep.subr.bf16.mxu0 %v1463
      %1963 = vmatpush1.bf16.msra.mxu0 %v1462
      %1964 = vmatprep.subr.bf16.mxu0 %v1465
      %1965 = vmatpush1.bf16.msra.mxu0 %v1464
      %1966 = vmatprep.subr.bf16.mxu0 %v1467
      %1967 = vmatpush1.bf16.msra.mxu0 %v1466
      %1968 = vmatprep.subr.bf16.mxu0 %v1469
      %1969 = vmatpush1.bf16.msra.mxu0 %v1468
      %1970 = vmatprep.subr.bf16.mxu0 %v1471
      %1971 = vmatpush1.bf16.msra.mxu0 %v1470
      %1972 = vmatprep.subr.bf16.mxu0 %v1473
      %1973 = vmatpush1.bf16.msra.mxu0 %v1472
      %1974 = vmatprep.subr.bf16.mxu0 %v1475
      %1975 = vmatpush1.bf16.msra.mxu0 %v1474
      %1976 = vmatprep.subr.bf16.mxu0 %v1477
      %1977 = vmatpush1.bf16.msra.mxu0 %v1476
      %1978 = vmatprep.subr.bf16.mxu0 %v1479
      %1979 = vmatpush1.bf16.msra.mxu0 %v1478
      %1980 = vmatprep.subr.bf16.mxu0 %v1481
      %1981 = vmatpush1.bf16.msra.mxu0 %v1480
      %1982 = vmatprep.subr.bf16.mxu0 %v1483
      %1983 = vmatpush1.bf16.msra.mxu0 %v1482
      %1984 = vmatprep.subr.bf16.mxu0 %v1485
      %1985 = vmatpush1.bf16.msra.mxu0 %v1484
      %1986 = vmatprep.subr.bf16.mxu0 %v1487
      %1987 = vmatpush1.bf16.msra.mxu0 %v1486
      %1988 = vmatprep.mubr.bf16.mxu0 %v746
      %1989 = vmatmul.mubr.bf16.gmra.mrb[0].mxu0 %v745
      %v1990 = vpop.f32.mrb[0].mxu0
      %v1991 = vadd.f32 %v1888, %v1990
      %v1992 = vpop.f32.mrb[0].mxu0
      %v1993 = vadd.f32 %v1890, %v1992
      %v1994 = vpop.f32.mrb[0].mxu0
      %v1995 = vadd.f32 %v1892, %v1994
      %v1996 = vpop.f32.mrb[0].mxu0
      %v1997 = vadd.f32 %v1894, %v1996
      %1998 = vmatprep.mubr.bf16.mxu0 %v757
      %1999 = vmatmul.mubr.bf16.gmra.mrb[0].mxu0 %v756
      %v2000 = vpop.f32.mrb[0].mxu0
      %v2001 = vadd.f32 %v1898, %v2000
      %v2002 = vpop.f32.mrb[0].mxu0
      %v2003 = vadd.f32 %v1900, %v2002
      %v2004 = vpop.f32.mrb[0].mxu0
      %v2005 = vadd.f32 %v1902, %v2004
      %v2006 = vpop.f32.mrb[0].mxu0
      %v2007 = vadd.f32 %v1904, %v2006
      %2008 = vmatprep.mubr.bf16.mxu0 %v768
      %2009 = vmatmul.mubr.bf16.gmra.mrb[0].mxu0 %v767
      %v2010 = vpop.f32.mrb[0].mxu0
      %v2011 = vadd.f32 %v1908, %v2010
      %v2012 = vpop.f32.mrb[0].mxu0
      %v2013 = vadd.f32 %v1910, %v2012
      %v2014 = vpop.f32.mrb[0].mxu0
      %v2015 = vadd.f32 %v1912, %v2014
      %v2016 = vpop.f32.mrb[0].mxu0
      %v2017 = vadd.f32 %v1914, %v2016
      %2018 = vmatprep.mubr.bf16.mxu0 %v779
      %2019 = vmatmul.mubr.bf16.gmra.mrb[0].mxu0 %v778
      %v2020 = vpop.f32.mrb[0].mxu0
      %v2021 = vadd.f32 %v1918, %v2020
      %v2022 = vpop.f32.mrb[0].mxu0
      %v2023 = vadd.f32 %v1920, %v2022
      %v2024 = vpop.f32.mrb[0].mxu0
      %v2025 = vadd.f32 %v1922, %v2024
      %v2026 = vpop.f32.mrb[0].mxu0
      %v2027 = vadd.f32 %v1924, %v2026
      %2028 = vmatprep.mubr.bf16.mxu0 %v790
      %2029 = vmatmul.mubr.bf16.gmra.mrb[0].mxu0 %v789
      %v2030 = vpop.f32.mrb[0].mxu0
      %v2031 = vadd.f32 %v1928, %v2030
      %v2032 = vpop.f32.mrb[0].mxu0
      %v2033 = vadd.f32 %v1930, %v2032
      %v2034 = vpop.f32.mrb[0].mxu0
      %v2035 = vadd.f32 %v1932, %v2034
      %v2036 = vpop.f32.mrb[0].mxu0
      %v2037 = vadd.f32 %v1934, %v2036
      %2038 = vmatprep.mubr.bf16.mxu0 %v801
      %2039 = vmatmul.mubr.bf16.gmra.mrb[0].mxu0 %v800
      %v2040 = vpop.f32.mrb[0].mxu0
      %v2041 = vadd.f32 %v1938, %v2040
      %v2042 = vpop.f32.mrb[0].mxu0
      %v2043 = vadd.f32 %v1940, %v2042
      %v2044 = vpop.f32.mrb[0].mxu0
      %v2045 = vadd.f32 %v1942, %v2044
      %v2046 = vpop.f32.mrb[0].mxu0
      %v2047 = vadd.f32 %v1944, %v2046
      %2048 = vmatprep.mubr.bf16.mxu0 %v812
      %2049 = vmatmul.mubr.bf16.gmra.mrb[0].mxu0 %v811
      %v2050 = vpop.f32.mrb[0].mxu0
      %v2051 = vadd.f32 %v1948, %v2050
      %v2052 = vpop.f32.mrb[0].mxu0
      %v2053 = vadd.f32 %v1950, %v2052
      %v2054 = vpop.f32.mrb[0].mxu0
      %v2055 = vadd.f32 %v1952, %v2054
      %v2056 = vpop.f32.mrb[0].mxu0
      %v2057 = vadd.f32 %v1954, %v2056
      %2058 = vdwg.mxu0
      %2059 = vmatprep.subr.bf16.mxu0 %v1489
      %2060 = vmatpush1.bf16.msra.mxu0 %v1488
      %2061 = vmatprep.subr.bf16.mxu0 %v1491
      %2062 = vmatpush1.bf16.msra.mxu0 %v1490
      %2063 = vmatprep.subr.bf16.mxu0 %v1493
      %2064 = vmatpush1.bf16.msra.mxu0 %v1492
      %2065 = vmatprep.subr.bf16.mxu0 %v1495
      %2066 = vmatpush1.bf16.msra.mxu0 %v1494
      %2067 = vmatprep.subr.bf16.mxu0 %v1497
      %2068 = vmatpush1.bf16.msra.mxu0 %v1496
      %2069 = vmatprep.subr.bf16.mxu0 %v1499
      %2070 = vmatpush1.bf16.msra.mxu0 %v1498
      %2071 = vmatprep.subr.bf16.mxu0 %v1501
      %2072 = vmatpush1.bf16.msra.mxu0 %v1500
      %2073 = vmatprep.subr.bf16.mxu0 %v1503
      %2074 = vmatpush1.bf16.msra.mxu0 %v1502
      %2075 = vmatprep.subr.bf16.mxu0 %v1505
      %2076 = vmatpush1.bf16.msra.mxu0 %v1504
      %2077 = vmatprep.subr.bf16.mxu0 %v1507
      %2078 = vmatpush1.bf16.msra.mxu0 %v1506
      %2079 = vmatprep.subr.bf16.mxu0 %v1509
      %2080 = vmatpush1.bf16.msra.mxu0 %v1508
      %2081 = vmatprep.subr.bf16.mxu0 %v1511
      %2082 = vmatpush1.bf16.msra.mxu0 %v1510
      %2083 = vmatprep.subr.bf16.mxu0 %v1513
      %2084 = vmatpush1.bf16.msra.mxu0 %v1512
      %2085 = vmatprep.subr.bf16.mxu0 %v1515
      %2086 = vmatpush1.bf16.msra.mxu0 %v1514
      %2087 = vmatprep.subr.bf16.mxu0 %v1517
      %2088 = vmatpush1.bf16.msra.mxu0 %v1516
      %2089 = vmatprep.subr.bf16.mxu0 %v1519
      %2090 = vmatpush1.bf16.msra.mxu0 %v1518
      %2091 = vmatprep.mubr.bf16.mxu0 %v748
      %2092 = vmatmul.mubr.bf16.gmra.mrb[0].mxu0 %v747
      %v2093 = vpop.f32.mrb[0].mxu0
      %v2094 = vadd.f32 %v1991, %v2093
      %v2095 = vpop.f32.mrb[0].mxu0
      %v2096 = vadd.f32 %v1993, %v2095
      %v2097 = vpop.f32.mrb[0].mxu0
      %v2098 = vadd.f32 %v1995, %v2097
      %v2099 = vpop.f32.mrb[0].mxu0
      %v2100 = vadd.f32 %v1997, %v2099
      %2101 = vmatprep.mubr.bf16.mxu0 %v759
      %2102 = vmatmul.mubr.bf16.gmra.mrb[0].mxu0 %v758
      %v2103 = vpop.f32.mrb[0].mxu0
      %v2104 = vadd.f32 %v2001, %v2103
      %v2105 = vpop.f32.mrb[0].mxu0
      %v2106 = vadd.f32 %v2003, %v2105
      %v2107 = vpop.f32.mrb[0].mxu0
      %v2108 = vadd.f32 %v2005, %v2107
      %v2109 = vpop.f32.mrb[0].mxu0
      %v2110 = vadd.f32 %v2007, %v2109
      %2111 = vmatprep.mubr.bf16.mxu0 %v770
      %2112 = vmatmul.mubr.bf16.gmra.mrb[0].mxu0 %v769
      %v2113 = vpop.f32.mrb[0].mxu0
      %v2114 = vadd.f32 %v2011, %v2113
      %v2115 = vpop.f32.mrb[0].mxu0
      %v2116 = vadd.f32 %v2013, %v2115
      %v2117 = vpop.f32.mrb[0].mxu0
      %v2118 = vadd.f32 %v2015, %v2117
      %v2119 = vpop.f32.mrb[0].mxu0
      %v2120 = vadd.f32 %v2017, %v2119
      %2121 = vmatprep.mubr.bf16.mxu0 %v781
      %2122 = vmatmul.mubr.bf16.gmra.mrb[0].mxu0 %v780
      %v2123 = vpop.f32.mrb[0].mxu0
      %v2124 = vadd.f32 %v2021, %v2123
      %v2125 = vpop.f32.mrb[0].mxu0
      %v2126 = vadd.f32 %v2023, %v2125
      %v2127 = vpop.f32.mrb[0].mxu0
      %v2128 = vadd.f32 %v2025, %v2127
      %v2129 = vpop.f32.mrb[0].mxu0
      %v2130 = vadd.f32 %v2027, %v2129
      %2131 = vmatprep.mubr.bf16.mxu0 %v792
      %2132 = vmatmul.mubr.bf16.gmra.mrb[0].mxu0 %v791
      %v2133 = vpop.f32.mrb[0].mxu0
      %v2134 = vadd.f32 %v2031, %v2133
      %v2135 = vpop.f32.mrb[0].mxu0
      %v2136 = vadd.f32 %v2033, %v2135
      %v2137 = vpop.f32.mrb[0].mxu0
      %v2138 = vadd.f32 %v2035, %v2137
      %v2139 = vpop.f32.mrb[0].mxu0
      %v2140 = vadd.f32 %v2037, %v2139
      %2141 = vmatprep.mubr.bf16.mxu0 %v803
      %2142 = vmatmul.mubr.bf16.gmra.mrb[0].mxu0 %v802
      %v2143 = vpop.f32.mrb[0].mxu0
      %v2144 = vadd.f32 %v2041, %v2143
      %v2145 = vpop.f32.mrb[0].mxu0
      %v2146 = vadd.f32 %v2043, %v2145
      %v2147 = vpop.f32.mrb[0].mxu0
      %v2148 = vadd.f32 %v2045, %v2147
      %v2149 = vpop.f32.mrb[0].mxu0
      %v2150 = vadd.f32 %v2047, %v2149
      %2151 = vmatprep.mubr.bf16.mxu0 %v814
      %2152 = vmatmul.mubr.bf16.gmra.mrb[0].mxu0 %v813
      %v2153 = vpop.f32.mrb[0].mxu0
      %v2154 = vadd.f32 %v2051, %v2153
      %v2155 = vpop.f32.mrb[0].mxu0
      %v2156 = vadd.f32 %v2053, %v2155
      %v2157 = vpop.f32.mrb[0].mxu0
      %v2158 = vadd.f32 %v2055, %v2157
      %v2159 = vpop.f32.mrb[0].mxu0
      %v2160 = vadd.f32 %v2057, %v2159
      %2161 = vdwg.mxu0
      %2162 = vmatprep.subr.bf16.mxu0 %v1521
      %2163 = vmatpush1.bf16.msra.mxu0 %v1520
      %2164 = vmatprep.subr.bf16.mxu0 %v1523
      %2165 = vmatpush1.bf16.msra.mxu0 %v1522
      %2166 = vmatprep.subr.bf16.mxu0 %v1525
      %2167 = vmatpush1.bf16.msra.mxu0 %v1524
      %2168 = vmatprep.subr.bf16.mxu0 %v1527
      %2169 = vmatpush1.bf16.msra.mxu0 %v1526
      %2170 = vmatprep.subr.bf16.mxu0 %v1529
      %2171 = vmatpush1.bf16.msra.mxu0 %v1528
      %2172 = vmatprep.subr.bf16.mxu0 %v1531
      %2173 = vmatpush1.bf16.msra.mxu0 %v1530
      %2174 = vmatprep.subr.bf16.mxu0 %v1533
      %2175 = vmatpush1.bf16.msra.mxu0 %v1532
      %2176 = vmatprep.subr.bf16.mxu0 %v1535
      %2177 = vmatpush1.bf16.msra.mxu0 %v1534
      %2178 = vmatprep.subr.bf16.mxu0 %v1537
      %2179 = vmatpush1.bf16.msra.mxu0 %v1536
      %2180 = vmatprep.subr.bf16.mxu0 %v1539
      %2181 = vmatpush1.bf16.msra.mxu0 %v1538
      %2182 = vmatprep.subr.bf16.mxu0 %v1541
      %2183 = vmatpush1.bf16.msra.mxu0 %v1540
      %2184 = vmatprep.subr.bf16.mxu0 %v1543
      %2185 = vmatpush1.bf16.msra.mxu0 %v1542
      %2186 = vmatprep.subr.bf16.mxu0 %v1545
      %2187 = vmatpush1.bf16.msra.mxu0 %v1544
      %2188 = vmatprep.subr.bf16.mxu0 %v1547
      %2189 = vmatpush1.bf16.msra.mxu0 %v1546
      %2190 = vmatprep.subr.bf16.mxu0 %v1549
      %2191 = vmatpush1.bf16.msra.mxu0 %v1548
      %2192 = vmatprep.subr.bf16.mxu0 %v1551
      %2193 = vmatpush1.bf16.msra.mxu0 %v1550
      %2194 = vmatprep.mubr.bf16.mxu0 %v750
      %2195 = vmatmul.mubr.bf16.gmra.mrb[0].mxu0 %v749
      %v2196 = vpop.f32.mrb[0].mxu0
      %v2197 = vadd.f32 %v2094, %v2196
      %v2198 = vpop.f32.mrb[0].mxu0
      %v2199 = vadd.f32 %v2096, %v2198
      %v2200 = vpop.f32.mrb[0].mxu0
      %v2201 = vadd.f32 %v2098, %v2200
      %v2202 = vpop.f32.mrb[0].mxu0
      %v2203 = vadd.f32 %v2100, %v2202
      %2204 = vmatprep.mubr.bf16.mxu0 %v761
      %2205 = vmatmul.mubr.bf16.gmra.mrb[0].mxu0 %v760
      %v2206 = vpop.f32.mrb[0].mxu0
      %v2207 = vadd.f32 %v2104, %v2206
      %v2208 = vpop.f32.mrb[0].mxu0
      %v2209 = vadd.f32 %v2106, %v2208
      %v2210 = vpop.f32.mrb[0].mxu0
      %v2211 = vadd.f32 %v2108, %v2210
      %v2212 = vpop.f32.mrb[0].mxu0
      %v2213 = vadd.f32 %v2110, %v2212
      %2214 = vmatprep.mubr.bf16.mxu0 %v772
      %2215 = vmatmul.mubr.bf16.gmra.mrb[0].mxu0 %v771
      %v2216 = vpop.f32.mrb[0].mxu0
      %v2217 = vadd.f32 %v2114, %v2216
      %v2218 = vpop.f32.mrb[0].mxu0
      %v2219 = vadd.f32 %v2116, %v2218
      %v2220 = vpop.f32.mrb[0].mxu0
      %v2221 = vadd.f32 %v2118, %v2220
      %v2222 = vpop.f32.mrb[0].mxu0
      %v2223 = vadd.f32 %v2120, %v2222
      %2224 = vmatprep.mubr.bf16.mxu0 %v783
      %2225 = vmatmul.mubr.bf16.gmra.mrb[0].mxu0 %v782
      %v2226 = vpop.f32.mrb[0].mxu0
      %v2227 = vadd.f32 %v2124, %v2226
      %v2228 = vpop.f32.mrb[0].mxu0
      %v2229 = vadd.f32 %v2126, %v2228
      %v2230 = vpop.f32.mrb[0].mxu0
      %v2231 = vadd.f32 %v2128, %v2230
      %v2232 = vpop.f32.mrb[0].mxu0
      %v2233 = vadd.f32 %v2130, %v2232
      %2234 = vmatprep.mubr.bf16.mxu0 %v794
      %2235 = vmatmul.mubr.bf16.gmra.mrb[0].mxu0 %v793
      %v2236 = vpop.f32.mrb[0].mxu0
      %v2237 = vadd.f32 %v2134, %v2236
      %v2238 = vpop.f32.mrb[0].mxu0
      %v2239 = vadd.f32 %v2136, %v2238
      %v2240 = vpop.f32.mrb[0].mxu0
      %v2241 = vadd.f32 %v2138, %v2240
      %v2242 = vpop.f32.mrb[0].mxu0
      %v2243 = vadd.f32 %v2140, %v2242
      %2244 = vmatprep.mubr.bf16.mxu0 %v805
      %2245 = vmatmul.mubr.bf16.gmra.mrb[0].mxu0 %v804
      %v2246 = vpop.f32.mrb[0].mxu0
      %v2247 = vadd.f32 %v2144, %v2246
      %v2248 = vpop.f32.mrb[0].mxu0
      %v2249 = vadd.f32 %v2146, %v2248
      %v2250 = vpop.f32.mrb[0].mxu0
      %v2251 = vadd.f32 %v2148, %v2250
      %v2252 = vpop.f32.mrb[0].mxu0
      %v2253 = vadd.f32 %v2150, %v2252
      %2254 = vmatprep.mubr.bf16.mxu0 %v816
      %2255 = vmatmul.mubr.bf16.gmra.mrb[0].mxu0 %v815
      %v2256 = vpop.f32.mrb[0].mxu0
      %v2257 = vadd.f32 %v2154, %v2256
      %v2258 = vpop.f32.mrb[0].mxu0
      %v2259 = vadd.f32 %v2156, %v2258
      %v2260 = vpop.f32.mrb[0].mxu0
      %v2261 = vadd.f32 %v2158, %v2260
      %v2262 = vpop.f32.mrb[0].mxu0
      %v2263 = vadd.f32 %v2160, %v2262
      %2264 = vdwg.mxu0
      %2265 = vmatprep.subr.bf16.mxu0 %v1553
      %2266 = vmatpush1.bf16.msra.mxu0 %v1552
      %2267 = vmatprep.subr.bf16.mxu0 %v1555
      %2268 = vmatpush1.bf16.msra.mxu0 %v1554
      %2269 = vmatprep.subr.bf16.mxu0 %v1557
      %2270 = vmatpush1.bf16.msra.mxu0 %v1556
      %2271 = vmatprep.subr.bf16.mxu0 %v1559
      %2272 = vmatpush1.bf16.msra.mxu0 %v1558
      %2273 = vmatprep.subr.bf16.mxu0 0
      %2274 = vmatpush1.bf16.msra.mxu0 0
      %2275 = vmatprep.subr.bf16.mxu0 0
      %2276 = vmatpush1.bf16.msra.mxu0 0
      %2277 = vmatprep.subr.bf16.mxu0 0
      %2278 = vmatpush1.bf16.msra.mxu0 0
      %2279 = vmatprep.subr.bf16.mxu0 0
      %2280 = vmatpush1.bf16.msra.mxu0 0
      %2281 = vmatprep.subr.bf16.mxu0 0
      %2282 = vmatpush1.bf16.msra.mxu0 0
      %2283 = vmatprep.subr.bf16.mxu0 0
      %2284 = vmatpush1.bf16.msra.mxu0 0
      %2285 = vmatprep.subr.bf16.mxu0 0
      %2286 = vmatpush1.bf16.msra.mxu0 0
      %2287 = vmatprep.subr.bf16.mxu0 0
      %2288 = vmatpush1.bf16.msra.mxu0 0
      %2289 = vmatprep.subr.bf16.mxu0 0
      %2290 = vmatpush1.bf16.msra.mxu0 0
      %2291 = vmatprep.subr.bf16.mxu0 0
      %2292 = vmatpush1.bf16.msra.mxu0 0
      %2293 = vmatprep.subr.bf16.mxu0 0
      %2294 = vmatpush1.bf16.msra.mxu0 0
      %2295 = vmatprep.subr.bf16.mxu0 0
      %2296 = vmatpush1.bf16.msra.mxu0 0
      %2297 = vmatprep.mubr.bf16.mxu0 0
      %2298 = vmatmul.mubr.bf16.gmra.mrb[0].mxu0 %v1730
      %v2299 = vpop.f32.mrb[0].mxu0
      %v2300 = vadd.f32 %v2197, %v2299
      %v2301 = vpop.f32.mrb[0].mxu0
      %v2302 = vadd.f32 %v2199, %v2301
      %v2303 = vpop.f32.mrb[0].mxu0
      %v2304 = vadd.f32 %v2201, %v2303
      %v2305 = vpop.f32.mrb[0].mxu0
      %v2306 = vadd.f32 %v2203, %v2305
      %2307 = vmatprep.mubr.bf16.mxu0 0
      %2308 = vmatmul.mubr.bf16.gmra.mrb[0].mxu0 %v1733
      %v2309 = vpop.f32.mrb[0].mxu0
      %v2310 = vadd.f32 %v2207, %v2309
      %v2311 = vpop.f32.mrb[0].mxu0
      %v2312 = vadd.f32 %v2209, %v2311
      %v2313 = vpop.f32.mrb[0].mxu0
      %v2314 = vadd.f32 %v2211, %v2313
      %v2315 = vpop.f32.mrb[0].mxu0
      %v2316 = vadd.f32 %v2213, %v2315
      %2317 = vmatprep.mubr.bf16.mxu0 0
      %2318 = vmatmul.mubr.bf16.gmra.mrb[0].mxu0 %v1736
      %v2319 = vpop.f32.mrb[0].mxu0
      %v2320 = vadd.f32 %v2217, %v2319
      %v2321 = vpop.f32.mrb[0].mxu0
      %v2322 = vadd.f32 %v2219, %v2321
      %v2323 = vpop.f32.mrb[0].mxu0
      %v2324 = vadd.f32 %v2221, %v2323
      %v2325 = vpop.f32.mrb[0].mxu0
      %v2326 = vadd.f32 %v2223, %v2325
      %2327 = vmatprep.mubr.bf16.mxu0 0
      %2328 = vmatmul.mubr.bf16.gmra.mrb[0].mxu0 %v1739
      %v2329 = vpop.f32.mrb[0].mxu0
      %v2330 = vadd.f32 %v2227, %v2329
      %v2331 = vpop.f32.mrb[0].mxu0
      %v2332 = vadd.f32 %v2229, %v2331
      %v2333 = vpop.f32.mrb[0].mxu0
      %v2334 = vadd.f32 %v2231, %v2333
      %v2335 = vpop.f32.mrb[0].mxu0
      %v2336 = vadd.f32 %v2233, %v2335
      %2337 = vmatprep.mubr.bf16.mxu0 0
      %2338 = vmatmul.mubr.bf16.gmra.mrb[0].mxu0 %v1742
      %v2339 = vpop.f32.mrb[0].mxu0
      %v2340 = vadd.f32 %v2237, %v2339
      %v2341 = vpop.f32.mrb[0].mxu0
      %v2342 = vadd.f32 %v2239, %v2341
      %v2343 = vpop.f32.mrb[0].mxu0
      %v2344 = vadd.f32 %v2241, %v2343
      %v2345 = vpop.f32.mrb[0].mxu0
      %v2346 = vadd.f32 %v2243, %v2345
      %2347 = vmatprep.mubr.bf16.mxu0 0
      %2348 = vmatmul.mubr.bf16.gmra.mrb[0].mxu0 %v1745
      %v2349 = vpop.f32.mrb[0].mxu0
      %v2350 = vadd.f32 %v2247, %v2349
      %v2351 = vpop.f32.mrb[0].mxu0
      %v2352 = vadd.f32 %v2249, %v2351
      %v2353 = vpop.f32.mrb[0].mxu0
      %v2354 = vadd.f32 %v2251, %v2353
      %v2355 = vpop.f32.mrb[0].mxu0
      %v2356 = vadd.f32 %v2253, %v2355
      %2357 = vmatprep.mubr.bf16.mxu0 0
      %2358 = vmatmul.mubr.bf16.gmra.mrb[0].mxu0 %v1748
      %v2359 = vpop.f32.mrb[0].mxu0
      %v2360 = vadd.f32 %v2257, %v2359
      %v2361 = vpop.f32.mrb[0].mxu0
      %v2362 = vadd.f32 %v2259, %v2361
      %v2363 = vpop.f32.mrb[0].mxu0
      %v2364 = vadd.f32 %v2261, %v2363
      %v2365 = vpop.f32.mrb[0].mxu0
      %v2366 = vadd.f32 %v2263, %v2365
      %2367 = vdwg.mxu0
      %vm2368 = vcmask 556032
      %v2369 = vsel %vm2368, %v2302, 0.0
      %v2370 = vadd.f32 %v2300, %v2369
      %2371 = vadd.xlane.f32.xlu0 %v2370
      %v2372 = vpop.xlane.xlu0 %2371
      %v2373 = vsel %vm2368, %v2306, 0.0
      %v2374 = vadd.f32 %v2304, %v2373
      %2375 = vadd.xlane.f32.xlu0 %v2374
      %v2376 = vpop.xlane.xlu0 %2375
      %v2377 = vsel %vm2368, %v2312, 0.0
      %v2378 = vadd.f32 %v2310, %v2377
      %2379 = vadd.xlane.f32.xlu0 %v2378
      %v2380 = vpop.xlane.xlu0 %2379
      %v2381 = vsel %vm2368, %v2316, 0.0
      %v2382 = vadd.f32 %v2314, %v2381
      %2383 = vadd.xlane.f32.xlu0 %v2382
      %v2384 = vpop.xlane.xlu0 %2383
      %v2385 = vsel %vm2368, %v2322, 0.0
      %v2386 = vadd.f32 %v2320, %v2385
      %2387 = vadd.xlane.f32.xlu0 %v2386
      %v2388 = vpop.xlane.xlu0 %2387
      %v2389 = vsel %vm2368, %v2326, 0.0
      %v2390 = vadd.f32 %v2324, %v2389
      %2391 = vadd.xlane.f32.xlu0 %v2390
      %v2392 = vpop.xlane.xlu0 %2391
      %v2393 = vsel %vm2368, %v2332, 0.0
      %v2394 = vadd.f32 %v2330, %v2393
      %2395 = vadd.xlane.f32.xlu0 %v2394
      %v2396 = vpop.xlane.xlu0 %2395
      %v2397 = vsel %vm2368, %v2336, 0.0
      %v2398 = vadd.f32 %v2334, %v2397
      %2399 = vadd.xlane.f32.xlu0 %v2398
      %v2400 = vpop.xlane.xlu0 %2399
      %v2401 = vsel %vm2368, %v2342, 0.0
      %v2402 = vadd.f32 %v2340, %v2401
      %2403 = vadd.xlane.f32.xlu0 %v2402
      %v2404 = vpop.xlane.xlu0 %2403
      %v2405 = vsel %vm2368, %v2346, 0.0
      %v2406 = vadd.f32 %v2344, %v2405
      %2407 = vadd.xlane.f32.xlu0 %v2406
      %v2408 = vpop.xlane.xlu0 %2407
      %v2409 = vsel %vm2368, %v2352, 0.0
      %v2410 = vadd.f32 %v2350, %v2409
      %2411 = vadd.xlane.f32.xlu0 %v2410
      %v2412 = vpop.xlane.xlu0 %2411
      %v2413 = vsel %vm2368, %v2356, 0.0
      %v2414 = vadd.f32 %v2354, %v2413
      %2415 = vadd.xlane.f32.xlu0 %v2414
      %v2416 = vpop.xlane.xlu0 %2415
      %v2417 = vsel %vm2368, %v2362, 0.0
      %v2418 = vadd.f32 %v2360, %v2417
      %2419 = vadd.xlane.f32.xlu0 %v2418
      %v2420 = vpop.xlane.xlu0 %2419
      %v2421 = vsel %vm2368, %v2366, 0.0
      %v2422 = vadd.f32 %v2364, %v2421
      %2423 = vadd.xlane.f32.xlu0 %v2422
      %v2424 = vpop.xlane.xlu0 %2423
      %v2425 = vmul.f32 %v2300, %v2300
      %v2426 = vmul.f32 %v2302, %v2302
      %v2427 = vmul.f32 %v2304, %v2304
      %v2428 = vmul.f32 %v2306, %v2306
      %v2429 = vmul.f32 %v2310, %v2310
      %v2430 = vmul.f32 %v2312, %v2312
      %v2431 = vmul.f32 %v2314, %v2314
      %v2432 = vmul.f32 %v2316, %v2316
      %v2433 = vmul.f32 %v2320, %v2320
      %v2434 = vmul.f32 %v2322, %v2322
      %v2435 = vmul.f32 %v2324, %v2324
      %v2436 = vmul.f32 %v2326, %v2326
      %v2437 = vmul.f32 %v2330, %v2330
      %v2438 = vmul.f32 %v2332, %v2332
      %v2439 = vmul.f32 %v2334, %v2334
      %v2440 = vmul.f32 %v2336, %v2336
      %v2441 = vmul.f32 %v2340, %v2340
      %v2442 = vmul.f32 %v2342, %v2342
      %v2443 = vmul.f32 %v2344, %v2344
      %v2444 = vmul.f32 %v2346, %v2346
      %v2445 = vmul.f32 %v2350, %v2350
      %v2446 = vmul.f32 %v2352, %v2352
      %v2447 = vmul.f32 %v2354, %v2354
      %v2448 = vmul.f32 %v2356, %v2356
      %v2449 = vmul.f32 %v2360, %v2360
      %v2450 = vmul.f32 %v2362, %v2362
      %v2451 = vmul.f32 %v2364, %v2364
      %v2452 = vmul.f32 %v2366, %v2366
      %v2453 = vsel %vm2368, %v2426, 0.0
      %v2454 = vadd.f32 %v2425, %v2453
      %2455 = vadd.xlane.f32.xlu0 %v2454
      %v2456 = vpop.xlane.xlu0 %2455
      %v2457 = vsel %vm2368, %v2428, 0.0
      %v2458 = vadd.f32 %v2427, %v2457
      %2459 = vadd.xlane.f32.xlu0 %v2458
      %v2460 = vpop.xlane.xlu0 %2459
      %v2461 = vsel %vm2368, %v2430, 0.0
      %v2462 = vadd.f32 %v2429, %v2461
      %2463 = vadd.xlane.f32.xlu0 %v2462
      %v2464 = vpop.xlane.xlu0 %2463
      %v2465 = vsel %vm2368, %v2432, 0.0
      %v2466 = vadd.f32 %v2431, %v2465
      %2467 = vadd.xlane.f32.xlu0 %v2466
      %v2468 = vpop.xlane.xlu0 %2467
      %v2469 = vsel %vm2368, %v2434, 0.0
      %v2470 = vadd.f32 %v2433, %v2469
      %2471 = vadd.xlane.f32.xlu0 %v2470
      %v2472 = vpop.xlane.xlu0 %2471
      %v2473 = vsel %vm2368, %v2436, 0.0
      %v2474 = vadd.f32 %v2435, %v2473
      %2475 = vadd.xlane.f32.xlu0 %v2474
      %v2476 = vpop.xlane.xlu0 %2475
      %v2477 = vsel %vm2368, %v2438, 0.0
      %v2478 = vadd.f32 %v2437, %v2477
      %2479 = vadd.xlane.f32.xlu0 %v2478
      %v2480 = vpop.xlane.xlu0 %2479
      %v2481 = vsel %vm2368, %v2440, 0.0
      %v2482 = vadd.f32 %v2439, %v2481
      %2483 = vadd.xlane.f32.xlu0 %v2482
      %v2484 = vpop.xlane.xlu0 %2483
      %v2485 = vsel %vm2368, %v2442, 0.0
      %v2486 = vadd.f32 %v2441, %v2485
      %2487 = vadd.xlane.f32.xlu0 %v2486
      %v2488 = vpop.xlane.xlu0 %2487
      %v2489 = vsel %vm2368, %v2444, 0.0
      %v2490 = vadd.f32 %v2443, %v2489
      %2491 = vadd.xlane.f32.xlu0 %v2490
      %v2492 = vpop.xlane.xlu0 %2491
      %v2493 = vsel %vm2368, %v2446, 0.0
      %v2494 = vadd.f32 %v2445, %v2493
      %2495 = vadd.xlane.f32.xlu0 %v2494
      %v2496 = vpop.xlane.xlu0 %2495
      %v2497 = vsel %vm2368, %v2448, 0.0
      %v2498 = vadd.f32 %v2447, %v2497
      %2499 = vadd.xlane.f32.xlu0 %v2498
      %v2500 = vpop.xlane.xlu0 %2499
      %v2501 = vsel %vm2368, %v2450, 0.0
      %v2502 = vadd.f32 %v2449, %v2501
      %2503 = vadd.xlane.f32.xlu0 %v2502
      %v2504 = vpop.xlane.xlu0 %2503
      %v2505 = vsel %vm2368, %v2452, 0.0
      %v2506 = vadd.f32 %v2451, %v2505
      %2507 = vadd.xlane.f32.xlu0 %v2506
      %v2508 = vpop.xlane.xlu0 %2507
      %v2509 = vmul.f32 %v2372, 0.0051020407
      %v2510 = vmul.f32 %v2376, 0.0051020407
      %v2511 = vmul.f32 %v2380, 0.0051020407
      %v2512 = vmul.f32 %v2384, 0.0051020407
      %v2513 = vmul.f32 %v2388, 0.0051020407
      %v2514 = vmul.f32 %v2392, 0.0051020407
      %v2515 = vmul.f32 %v2396, 0.0051020407
      %v2516 = vmul.f32 %v2400, 0.0051020407
      %v2517 = vmul.f32 %v2404, 0.0051020407
      %v2518 = vmul.f32 %v2408, 0.0051020407
      %v2519 = vmul.f32 %v2412, 0.0051020407
      %v2520 = vmul.f32 %v2416, 0.0051020407
      %v2521 = vmul.f32 %v2420, 0.0051020407
      %v2522 = vmul.f32 %v2424, 0.0051020407
      %v2523 = vmul.f32 %v2456, 0.0051020407
      %v2524 = vmul.f32 %v2460, 0.0051020407
      %v2525 = vmul.f32 %v2464, 0.0051020407
      %v2526 = vmul.f32 %v2468, 0.0051020407
      %v2527 = vmul.f32 %v2472, 0.0051020407
      %v2528 = vmul.f32 %v2476, 0.0051020407
      %v2529 = vmul.f32 %v2480, 0.0051020407
      %v2530 = vmul.f32 %v2484, 0.0051020407
      %v2531 = vmul.f32 %v2488, 0.0051020407
      %v2532 = vmul.f32 %v2492, 0.0051020407
      %v2533 = vmul.f32 %v2496, 0.0051020407
      %v2534 = vmul.f32 %v2500, 0.0051020407
      %v2535 = vmul.f32 %v2504, 0.0051020407
      %v2536 = vmul.f32 %v2508, 0.0051020407
      %v2537 = vmul.f32 %v2509, %v2509
      %v2538 = vmul.f32 %v2510, %v2510
      %v2539 = vmul.f32 %v2511, %v2511
      %v2540 = vmul.f32 %v2512, %v2512
      %v2541 = vmul.f32 %v2513, %v2513
      %v2542 = vmul.f32 %v2514, %v2514
      %v2543 = vmul.f32 %v2515, %v2515
      %v2544 = vmul.f32 %v2516, %v2516
      %v2545 = vmul.f32 %v2517, %v2517
      %v2546 = vmul.f32 %v2518, %v2518
      %v2547 = vmul.f32 %v2519, %v2519
      %v2548 = vmul.f32 %v2520, %v2520
      %v2549 = vmul.f32 %v2521, %v2521
      %v2550 = vmul.f32 %v2522, %v2522
      %v2551 = vsub.f32 %v2523, %v2537
      %v2552 = vsub.f32 %v2524, %v2538
      %v2553 = vsub.f32 %v2525, %v2539
      %v2554 = vsub.f32 %v2526, %v2540
      %v2555 = vsub.f32 %v2527, %v2541
      %v2556 = vsub.f32 %v2528, %v2542
      %v2557 = vsub.f32 %v2529, %v2543
      %v2558 = vsub.f32 %v2530, %v2544
      %v2559 = vsub.f32 %v2531, %v2545
      %v2560 = vsub.f32 %v2532, %v2546
      %v2561 = vsub.f32 %v2533, %v2547
      %v2562 = vsub.f32 %v2534, %v2548
      %v2563 = vsub.f32 %v2535, %v2549
      %v2564 = vsub.f32 %v2536, %v2550
      %v2565 = vmax.f32 %v2551, 0.0
      %v2566 = vmax.f32 %v2552, 0.0
      %v2567 = vmax.f32 %v2553, 0.0
      %v2568 = vmax.f32 %v2554, 0.0
      %v2569 = vmax.f32 %v2555, 0.0
      %v2570 = vmax.f32 %v2556, 0.0
      %v2571 = vmax.f32 %v2557, 0.0
      %v2572 = vmax.f32 %v2558, 0.0
      %v2573 = vmax.f32 %v2559, 0.0
      %v2574 = vmax.f32 %v2560, 0.0
      %v2575 = vmax.f32 %v2561, 0.0
      %v2576 = vmax.f32 %v2562, 0.0
      %v2577 = vmax.f32 %v2563, 0.0
      %v2578 = vmax.f32 %v2564, 0.0
      %v2579 = vadd.f32 %v2565, 1e-05
      %v2580 = vadd.f32 %v2566, 1e-05
      %v2581 = vadd.f32 %v2567, 1e-05
      %v2582 = vadd.f32 %v2568, 1e-05
      %v2583 = vadd.f32 %v2569, 1e-05
      %v2584 = vadd.f32 %v2570, 1e-05
      %v2585 = vadd.f32 %v2571, 1e-05
      %v2586 = vadd.f32 %v2572, 1e-05
      %v2587 = vadd.f32 %v2573, 1e-05
      %v2588 = vadd.f32 %v2574, 1e-05
      %v2589 = vadd.f32 %v2575, 1e-05
      %v2590 = vadd.f32 %v2576, 1e-05
      %v2591 = vadd.f32 %v2577, 1e-05
      %v2592 = vadd.f32 %v2578, 1e-05
      %v2593 = vrsqrt.pop %v2579
      %v2594 = vrsqrt.pop %v2580
      %v2595 = vrsqrt.pop %v2581
      %v2596 = vrsqrt.pop %v2582
      %v2597 = vrsqrt.pop %v2583
      %v2598 = vrsqrt.pop %v2584
      %v2599 = vrsqrt.pop %v2585
      %v2600 = vrsqrt.pop %v2586
      %v2601 = vrsqrt.pop %v2587
      %v2602 = vrsqrt.pop %v2588
      %v2603 = vrsqrt.pop %v2589
      %v2604 = vrsqrt.pop %v2590
      %v2605 = vrsqrt.pop %v2591
      %v2606 = vrsqrt.pop %v2592
      %v2607 = vld [vmem:[%s235] sm:$0xff]
      %v2608 = vld [vmem:[%s235 + $0x8] sm:$0xff]
      %v2609 = vld [vmem:[%s235 + $0x10] sm:$0xff]
      %v2610 = vld [vmem:[%s235 + $0x18] sm:$0xff]
      %v2611 = vld [vmem:[%s235 + $0x20] sm:$0xff]
      %v2612 = vld [vmem:[%s235 + $0x28] sm:$0xff]
      %v2613 = vld [vmem:[%s235 + $0x30] sm:$0xff]
      %v2614 = vld [vmem:[%s235 + $0x38] sm:$0xff]
      %v2615 = vld [vmem:[%s235 + $0x40] sm:$0xff]
      %v2616 = vld [vmem:[%s235 + $0x48] sm:$0xff]
      %v2617 = vld [vmem:[%s235 + $0x50] sm:$0xff]
      %v2618 = vld [vmem:[%s235 + $0x58] sm:$0xff]
      %v2619 = vld [vmem:[%s235 + $0x60] sm:$0xff]
      %v2620 = vld [vmem:[%s235 + $0x68] sm:$0xff]
      %v2621 = vmul.f32 %v2607, %v2593
      %v2622 = vmul.f32 %v2608, %v2594
      %v2623 = vmul.f32 %v2609, %v2595
      %v2624 = vmul.f32 %v2610, %v2596
      %v2625 = vmul.f32 %v2611, %v2597
      %v2626 = vmul.f32 %v2612, %v2598
      %v2627 = vmul.f32 %v2613, %v2599
      %v2628 = vmul.f32 %v2614, %v2600
      %v2629 = vmul.f32 %v2615, %v2601
      %v2630 = vmul.f32 %v2616, %v2602
      %v2631 = vmul.f32 %v2617, %v2603
      %v2632 = vmul.f32 %v2618, %v2604
      %v2633 = vmul.f32 %v2619, %v2605
      %v2634 = vmul.f32 %v2620, %v2606
      %v2635 = vld [vmem:[%s241] sm:$0xff]
      %v2636 = vld [vmem:[%s241 + $0x8] sm:$0xff]
      %v2637 = vld [vmem:[%s241 + $0x10] sm:$0xff]
      %v2638 = vld [vmem:[%s241 + $0x18] sm:$0xff]
      %v2639 = vld [vmem:[%s241 + $0x20] sm:$0xff]
      %v2640 = vld [vmem:[%s241 + $0x28] sm:$0xff]
      %v2641 = vld [vmem:[%s241 + $0x30] sm:$0xff]
      %v2642 = vld [vmem:[%s241 + $0x38] sm:$0xff]
      %v2643 = vld [vmem:[%s241 + $0x40] sm:$0xff]
      %v2644 = vld [vmem:[%s241 + $0x48] sm:$0xff]
      %v2645 = vld [vmem:[%s241 + $0x50] sm:$0xff]
      %v2646 = vld [vmem:[%s241 + $0x58] sm:$0xff]
      %v2647 = vld [vmem:[%s241 + $0x60] sm:$0xff]
      %v2648 = vld [vmem:[%s241 + $0x68] sm:$0xff]
      %v2649 = vmul.f32 %v2509, %v2621
      %v2650 = vmul.f32 %v2510, %v2622
      %v2651 = vmul.f32 %v2511, %v2623
      %v2652 = vmul.f32 %v2512, %v2624
      %v2653 = vmul.f32 %v2513, %v2625
      %v2654 = vmul.f32 %v2514, %v2626
      %v2655 = vmul.f32 %v2515, %v2627
      %v2656 = vmul.f32 %v2516, %v2628
      %v2657 = vmul.f32 %v2517, %v2629
      %v2658 = vmul.f32 %v2518, %v2630
      %v2659 = vmul.f32 %v2519, %v2631
      %v2660 = vmul.f32 %v2520, %v2632
      %v2661 = vmul.f32 %v2521, %v2633
      %v2662 = vmul.f32 %v2522, %v2634
      %v2663 = vsub.f32 %v2635, %v2649
      %v2664 = vsub.f32 %v2636, %v2650
      %v2665 = vsub.f32 %v2637, %v2651
      %v2666 = vsub.f32 %v2638, %v2652
      %v2667 = vsub.f32 %v2639, %v2653
      %v2668 = vsub.f32 %v2640, %v2654
      %v2669 = vsub.f32 %v2641, %v2655
      %v2670 = vsub.f32 %v2642, %v2656
      %v2671 = vsub.f32 %v2643, %v2657
      %v2672 = vsub.f32 %v2644, %v2658
      %v2673 = vsub.f32 %v2645, %v2659
      %v2674 = vsub.f32 %v2646, %v2660
      %v2675 = vsub.f32 %v2647, %v2661
      %v2676 = vsub.f32 %v2648, %v2662
      %2678 = vset.pattern.permute.xlu0 0
      %2679 = vperm.xlu0 %2678, %v2621
      %v2680 = vpop.permute.xlu0 %2679
      %2683 = vset.pattern.permute.xlu0 0
      %2684 = vperm.xlu0 %2683, %v2622
      %v2685 = vpop.permute.xlu0 %2684
      %2688 = vset.pattern.permute.xlu0 0
      %2689 = vperm.xlu0 %2688, %v2623
      %v2690 = vpop.permute.xlu0 %2689
      %2693 = vset.pattern.permute.xlu0 0
      %2694 = vperm.xlu0 %2693, %v2624
      %v2695 = vpop.permute.xlu0 %2694
      %2698 = vset.pattern.permute.xlu0 0
      %2699 = vperm.xlu0 %2698, %v2625
      %v2700 = vpop.permute.xlu0 %2699
      %2703 = vset.pattern.permute.xlu0 0
      %2704 = vperm.xlu0 %2703, %v2626
      %v2705 = vpop.permute.xlu0 %2704
      %2708 = vset.pattern.permute.xlu0 0
      %2709 = vperm.xlu0 %2708, %v2627
      %v2710 = vpop.permute.xlu0 %2709
      %2713 = vset.pattern.permute.xlu0 0
      %2714 = vperm.xlu0 %2713, %v2628
      %v2715 = vpop.permute.xlu0 %2714
      %2718 = vset.pattern.permute.xlu0 0
      %2719 = vperm.xlu0 %2718, %v2629
      %v2720 = vpop.permute.xlu0 %2719
      %2723 = vset.pattern.permute.xlu0 0
      %2724 = vperm.xlu0 %2723, %v2630
      %v2725 = vpop.permute.xlu0 %2724
      %2728 = vset.pattern.permute.xlu0 0
      %2729 = vperm.xlu0 %2728, %v2631
      %v2730 = vpop.permute.xlu0 %2729
      %2733 = vset.pattern.permute.xlu0 0
      %2734 = vperm.xlu0 %2733, %v2632
      %v2735 = vpop.permute.xlu0 %2734
      %2738 = vset.pattern.permute.xlu0 0
      %2739 = vperm.xlu0 %2738, %v2633
      %v2740 = vpop.permute.xlu0 %2739
      %2743 = vset.pattern.permute.xlu0 0
      %2744 = vperm.xlu0 %2743, %v2634
      %v2745 = vpop.permute.xlu0 %2744
      %v2747 = vmul.f32 %v2300, %v2680
      %v2748 = vmul.f32 %v2302, %v2680
      %v2749 = vmul.f32 %v2304, %v2685
      %v2750 = vmul.f32 %v2306, %v2685
      %v2751 = vmul.f32 %v2310, %v2690
      %v2752 = vmul.f32 %v2312, %v2690
      %v2753 = vmul.f32 %v2314, %v2695
      %v2754 = vmul.f32 %v2316, %v2695
      %v2755 = vmul.f32 %v2320, %v2700
      %v2756 = vmul.f32 %v2322, %v2700
      %v2757 = vmul.f32 %v2324, %v2705
      %v2758 = vmul.f32 %v2326, %v2705
      %v2759 = vmul.f32 %v2330, %v2710
      %v2760 = vmul.f32 %v2332, %v2710
      %v2761 = vmul.f32 %v2334, %v2715
      %v2762 = vmul.f32 %v2336, %v2715
      %v2763 = vmul.f32 %v2340, %v2720
      %v2764 = vmul.f32 %v2342, %v2720
      %v2765 = vmul.f32 %v2344, %v2725
      %v2766 = vmul.f32 %v2346, %v2725
      %v2767 = vmul.f32 %v2350, %v2730
      %v2768 = vmul.f32 %v2352, %v2730
      %v2769 = vmul.f32 %v2354, %v2735
      %v2770 = vmul.f32 %v2356, %v2735
      %v2771 = vmul.f32 %v2360, %v2740
      %v2772 = vmul.f32 %v2362, %v2740
      %v2773 = vmul.f32 %v2364, %v2745
      %v2774 = vmul.f32 %v2366, %v2745
      %2776 = vset.pattern.permute.xlu0 0
      %2777 = vperm.xlu0 %2776, %v2663
      %v2778 = vpop.permute.xlu0 %2777
      %2781 = vset.pattern.permute.xlu0 0
      %2782 = vperm.xlu0 %2781, %v2664
      %v2783 = vpop.permute.xlu0 %2782
      %2786 = vset.pattern.permute.xlu0 0
      %2787 = vperm.xlu0 %2786, %v2665
      %v2788 = vpop.permute.xlu0 %2787
      %2791 = vset.pattern.permute.xlu0 0
      %2792 = vperm.xlu0 %2791, %v2666
      %v2793 = vpop.permute.xlu0 %2792
      %2796 = vset.pattern.permute.xlu0 0
      %2797 = vperm.xlu0 %2796, %v2667
      %v2798 = vpop.permute.xlu0 %2797
      %2801 = vset.pattern.permute.xlu0 0
      %2802 = vperm.xlu0 %2801, %v2668
      %v2803 = vpop.permute.xlu0 %2802
      %2806 = vset.pattern.permute.xlu0 0
      %2807 = vperm.xlu0 %2806, %v2669
      %v2808 = vpop.permute.xlu0 %2807
      %2811 = vset.pattern.permute.xlu0 0
      %2812 = vperm.xlu0 %2811, %v2670
      %v2813 = vpop.permute.xlu0 %2812
      %2816 = vset.pattern.permute.xlu0 0
      %2817 = vperm.xlu0 %2816, %v2671
      %v2818 = vpop.permute.xlu0 %2817
      %2821 = vset.pattern.permute.xlu0 0
      %2822 = vperm.xlu0 %2821, %v2672
      %v2823 = vpop.permute.xlu0 %2822
      %2826 = vset.pattern.permute.xlu0 0
      %2827 = vperm.xlu0 %2826, %v2673
      %v2828 = vpop.permute.xlu0 %2827
      %2831 = vset.pattern.permute.xlu0 0
      %2832 = vperm.xlu0 %2831, %v2674
      %v2833 = vpop.permute.xlu0 %2832
      %2836 = vset.pattern.permute.xlu0 0
      %2837 = vperm.xlu0 %2836, %v2675
      %v2838 = vpop.permute.xlu0 %2837
      %2841 = vset.pattern.permute.xlu0 0
      %2842 = vperm.xlu0 %2841, %v2676
      %v2843 = vpop.permute.xlu0 %2842
      %v2845 = vadd.f32 %v2747, %v2778
      %v2846 = vadd.f32 %v2748, %v2778
      %v2847 = vadd.f32 %v2749, %v2783
      %v2848 = vadd.f32 %v2750, %v2783
      %v2849 = vadd.f32 %v2751, %v2788
      %v2850 = vadd.f32 %v2752, %v2788
      %v2851 = vadd.f32 %v2753, %v2793
      %v2852 = vadd.f32 %v2754, %v2793
      %v2853 = vadd.f32 %v2755, %v2798
      %v2854 = vadd.f32 %v2756, %v2798
      %v2855 = vadd.f32 %v2757, %v2803
      %v2856 = vadd.f32 %v2758, %v2803
      %v2857 = vadd.f32 %v2759, %v2808
      %v2858 = vadd.f32 %v2760, %v2808
      %v2859 = vadd.f32 %v2761, %v2813
      %v2860 = vadd.f32 %v2762, %v2813
      %v2861 = vadd.f32 %v2763, %v2818
      %v2862 = vadd.f32 %v2764, %v2818
      %v2863 = vadd.f32 %v2765, %v2823
      %v2864 = vadd.f32 %v2766, %v2823
      %v2865 = vadd.f32 %v2767, %v2828
      %v2866 = vadd.f32 %v2768, %v2828
      %v2867 = vadd.f32 %v2769, %v2833
      %v2868 = vadd.f32 %v2770, %v2833
      %v2869 = vadd.f32 %v2771, %v2838
      %v2870 = vadd.f32 %v2772, %v2838
      %v2871 = vadd.f32 %v2773, %v2843
      %v2872 = vadd.f32 %v2774, %v2843
      %2873 = vst [vmem:[%s248] sm:$0xff] %v2845
      %2874 = vst.msk [vmem:[%s248 + $0x8] sm:$0xff] %vm2368, %v2846
      %2875 = vst [vmem:[%s248 + $0x10] sm:$0xff] %v2847
      %2876 = vst.msk [vmem:[%s248 + $0x18] sm:$0xff] %vm2368, %v2848
      %2877 = vst [vmem:[%s248 + $0x20] sm:$0xff] %v2849
      %2878 = vst.msk [vmem:[%s248 + $0x28] sm:$0xff] %vm2368, %v2850
      %2879 = vst [vmem:[%s248 + $0x30] sm:$0xff] %v2851
      %2880 = vst.msk [vmem:[%s248 + $0x38] sm:$0xff] %vm2368, %v2852
      %2881 = vst [vmem:[%s248 + $0x40] sm:$0xff] %v2853
      %2882 = vst.msk [vmem:[%s248 + $0x48] sm:$0xff] %vm2368, %v2854
      %2883 = vst [vmem:[%s248 + $0x50] sm:$0xff] %v2855
      %2884 = vst.msk [vmem:[%s248 + $0x58] sm:$0xff] %vm2368, %v2856
      %2885 = vst [vmem:[%s248 + $0x60] sm:$0xff] %v2857
      %2886 = vst.msk [vmem:[%s248 + $0x68] sm:$0xff] %vm2368, %v2858
      %2887 = vst [vmem:[%s248 + $0x70] sm:$0xff] %v2859
      %2888 = vst.msk [vmem:[%s248 + $0x78] sm:$0xff] %vm2368, %v2860
      %2889 = vst [vmem:[%s248 + $0x80] sm:$0xff] %v2861
      %2890 = vst.msk [vmem:[%s248 + $0x88] sm:$0xff] %vm2368, %v2862
      %2891 = vst [vmem:[%s248 + $0x90] sm:$0xff] %v2863
      %2892 = vst.msk [vmem:[%s248 + $0x98] sm:$0xff] %vm2368, %v2864
      %2893 = vst [vmem:[%s248 + $0xa0] sm:$0xff] %v2865
      %2894 = vst.msk [vmem:[%s248 + $0xa8] sm:$0xff] %vm2368, %v2866
      %2895 = vst [vmem:[%s248 + $0xb0] sm:$0xff] %v2867
      %2896 = vst.msk [vmem:[%s248 + $0xb8] sm:$0xff] %vm2368, %v2868
      %2897 = vst [vmem:[%s248 + $0xc0] sm:$0xff] %v2869
      %2898 = vst.msk [vmem:[%s248 + $0xc8] sm:$0xff] %vm2368, %v2870
      %2899 = vst [vmem:[%s248 + $0xd0] sm:$0xff] %v2871
      %2900 = vst.msk [vmem:[%s248 + $0xd8] sm:$0xff] %vm2368, %v2872
      %s2901 = smul.u32 14, %s15
      %p2902 = scmp.lt.s32.totalorder %s2901, 27
      %s2903 = scalar_select %p2902, %s2901, 27
      %s2904 = smul.addr %s2903, 2
      %s2905 = smul.addr %s2904, 8
      %s2906 = scalar_lea.vmem %s4, %s2905
      // Predicated region
      $region37: #{tpu_custom_call.1} parent=35 // pred_check
        %p2907 = pneg %p132
      $region38: #{tpu_custom_call.1} parent=35 // pred_check_branch
        %2909 = sbr.rel (%p2907) target = $region40
      $region39: #{tpu_custom_call.1} parent=35 // pred_region
        %s2910 = smul.u32 14, %s15
      $region40: #{tpu_custom_call.1} parent=35 // pred_fallthru
        _
    $region36: #{tpu_custom_call.1} parent=5 // pred_fallthru
      _
    %p2911 = scmp.le.s32.totalorder 2, %s10
    // Predicated region
    $region41: #{tpu_custom_call.1} parent=5 // pred_check
      %p2912 = pneg %p2911
    $region42: #{tpu_custom_call.1} parent=5 // pred_check_branch
      %2914 = sbr.rel (%p2912) target = $region44
    $region43: #{tpu_custom_call.1} parent=5 // pred_region
      %s2915 = ssub.s32 %s10, 2
      // Predicated region
      $region45: #{tpu_custom_call.1} parent=43 // pred_check
        %p2916 = pneg %p138
      $region46: #{tpu_custom_call.1} parent=43 // pred_check_branch
        %2918 = sbr.rel (%p2916) target = $region48
      $region47: #{tpu_custom_call.1} parent=43 // pred_region
        %s2919 = smul.u32 14, %s16
        %p2920 = scmp.lt.s32.totalorder %s2919, 27
        %s2921 = scalar_select %p2920, %s2919, 27
        %s2922 = smul.addr %s2921, 2
        %s2923 = smul.addr %s2922, 8
        %s2924 = scalar_lea.vmem %s4, %s2923
      $region48: #{tpu_custom_call.1} parent=43 // pred_fallthru
        _
    $region44: #{tpu_custom_call.1} parent=5 // pred_fallthru
      _
  $region6: #{tpu_custom_call.1} parent=0 // loop_footer
    %s14 = sadd.s32 1, %s10
  $region7: #{tpu_custom_call.1} parent=0 // loop_footer_branch
    %9 = sbr.rel target = $region3
  $region8: #{tpu_custom_call.1} parent=0 // loop_exit
    _

</llo_original>
